<compile_context>
chip_gen: v6e
topology: v6e:2x2x1
jax: 0.10.0
libtpu: 0.0.40
codegen_flags: <defaults>
</compile_context>

<pallas_src>
import functools

import jax
import jax.numpy as jnp
from jax.experimental import pallas as pl
from jax.experimental.pallas import tpu as pltpu


def _round_up(n, m):
    return ((n + m - 1) // m) * m


def _softmax(scaled_logits, recip):
    m = jnp.max(scaled_logits, axis=-1, keepdims=True)
    p = jnp.exp(scaled_logits - m)
    return p * recip(jnp.sum(p, axis=-1, keepdims=True))


def _entmax_bisect(scaled_logits, alpha, n_iter, recip):
    """alpha-entmax via bisection (mirrors entmax.entmax_bisect).

    Pure jnp ops only, so the exact same routine is used inside the Pallas kernel
    and in the pure-JAX reference (only the reciprocal differs).
    """
    d = scaled_logits.shape[-1]
    am1 = alpha - 1.0
    expo = 1.0 / am1
    X = scaled_logits * am1
    max_val = jnp.max(X, axis=-1, keepdims=True)
    tau_lo = max_val - 1.0
    tau_hi = max_val - (1.0 / d) ** am1

    def _p(z):
        zc = jnp.maximum(z, 0.0)
        if expo == 2.0:          # alpha == 1.5: plain square, no transcendental pow
            return zc * zc
        return zc ** expo

    f_lo = jnp.sum(_p(X - tau_lo), axis=-1, keepdims=True) - 1.0
    dm = tau_hi - tau_lo
    p_m = _p(X - tau_lo)
    for _ in range(n_iter):      # static unroll; n_iter is small (25), data is one vreg
        dm = dm * 0.5
        tau_m = tau_lo + dm
        p_m = _p(X - tau_m)
        f_m = jnp.sum(p_m, axis=-1, keepdims=True) - 1.0
        tau_lo = jnp.where(f_m * f_lo >= 0.0, tau_m, tau_lo)
    return p_m * recip(jnp.sum(p_m, axis=-1, keepdims=True))


def _moe_kernel_body(x_ref, wr_ref, br_ref, w1_ref, b1_ref, sel_ref, w2_ref,
                     b2_ref, o_ref, *, alpha, inv_temp, n_iter, threshold):
    x = x_ref[...]                                                    # (TN, C)

    # ---- router: logits -> gating probabilities ----------------------------
    logits = jnp.dot(x, wr_ref[...], preferred_element_type=jnp.float32)
    logits = (logits + br_ref[...]) * inv_temp                        # (TN, E)
    recip = lambda s: pl.reciprocal(s, approx=True)                   # EUP slot
    if alpha == 1.0:
        gates = _softmax(logits, recip)
    else:
        gates = _entmax_bisect(logits, alpha, n_iter, recip)
    # activation_threshold: inactive experts contribute exactly zero (matches the
    # PyTorch skip of tokens with gate <= threshold).
    gates = jnp.where(gates > threshold, gates, 0.0)                  # (TN, E)

    # ---- all experts fused: two lane-dense MXU matmuls ----------------------
    # layer 1 of every expert at once: (TN, C) x (C, E*H)
    h = jnp.dot(x, w1_ref[...], preferred_element_type=jnp.float32) + b1_ref[...]
    h = jnp.maximum(h, 0.0)                                           # ReLU
    # broadcast gate of expert e over its H hidden columns via a 0/1 selector matmul
    g_wide = jnp.dot(gates, sel_ref[...], preferred_element_type=jnp.float32)  # (TN, E*H)
    h = h * g_wide
    # layer 2 of every expert + weighted sum over experts in one (TN,E*H)x(E*H,C) matmul
    y = jnp.dot(h, w2_ref[...], preferred_element_type=jnp.float32)
    y = y + jnp.dot(gates, b2_ref[...], preferred_element_type=jnp.float32)    # sum_e g_e*b2_e
    # TODO(synk): training-mode dropout on expert outputs (identity in eval mode).
    o_ref[...] = y.astype(o_ref.dtype)


def sparse_moe(x, router_w, router_b, w1, b1, w2, b2, *,
               alpha=1.5, temperature=1.0, n_iter=25,
               activation_threshold=1e-9, token_tile=512):
    """Forward pass of SparseMoE.  Weights use PyTorch nn.Linear layout:
       router_w (E, C), router_b (E,), w1 (E, 4C, C), b1 (E, 4C), w2 (E, C, 4C), b2 (E, C).
    """
    B, T, C = x.shape
    E, H, C1 = w1.shape
    assert C1 == C and router_w.shape == (E, C) and w2.shape == (E, C, H)

    N = B * T
    x2 = x.reshape(N, C)

    # One-time layout plumbing (outside the kernel): contraction dim leading everywhere.
    wr_t = router_w.T                                                  # (C, E)
    br2 = router_b.reshape(1, E)
    w1cat = jnp.transpose(w1, (2, 0, 1)).reshape(C, E * H)             # (C, E*H)
    b1cat = b1.reshape(1, E * H)
    w2cat = jnp.transpose(w2, (0, 2, 1)).reshape(E * H, C)             # (E*H, C)
    sel = jnp.repeat(jnp.eye(E, dtype=x.dtype), H, axis=1)             # (E, E*H) gate expander

    # Token tiling (grid=(1,) at toy sizes; scales to long sequences).
    TN = min(_round_up(N, 8), _round_up(token_tile, 8))
    Npad = _round_up(N, TN)
    if Npad != N:
        x2 = jnp.pad(x2, ((0, Npad - N), (0, 0)))
    grid = (Npad // TN,)

    kernel = functools.partial(
        _moe_kernel_body, alpha=float(alpha), inv_temp=1.0 / float(temperature),
        n_iter=int(n_iter), threshold=float(activation_threshold))

    out = pl.pallas_call(
        kernel,
        out_shape=jax.ShapeDtypeStruct((Npad, C), x.dtype),
        grid=grid,
        in_specs=[
            pl.BlockSpec((TN, C), lambda i: (i, 0)),        # x tokens (tiled)
            pl.BlockSpec((C, E), lambda i: (0, 0)),         # router weight (pre-T)
            pl.BlockSpec((1, E), lambda i: (0, 0)),         # router bias
            pl.BlockSpec((C, E * H), lambda i: (0, 0)),     # all experts layer-1 W
            pl.BlockSpec((1, E * H), lambda i: (0, 0)),     # all experts layer-1 b
            pl.BlockSpec((E, E * H), lambda i: (0, 0)),     # gate expander
            pl.BlockSpec((E * H, C), lambda i: (0, 0)),     # all experts layer-2 W
            pl.BlockSpec((E, C), lambda i: (0, 0)),         # all experts layer-2 b
        ],
        out_specs=pl.BlockSpec((TN, C), lambda i: (i, 0)),
        compiler_params=pltpu.CompilerParams(
            dimension_semantics=("parallel",)),
    )(x2, wr_t, br2, w1cat, b1cat, sel, w2cat, b2)

    return out[:N].reshape(B, T, C)


def reference_sparse_moe(x, router_w, router_b, w1, b1, w2, b2, *,
                         alpha=1.5, temperature=1.0, n_iter=25,
                         activation_threshold=1e-9):
    """Pure-JAX reference mirroring the PyTorch forward (eval mode)."""
    B, T, C = x.shape
    E = router_w.shape[0]
    xt = x.reshape(-1, C)
    scaled = (xt @ router_w.T + router_b) / temperature
    if alpha == 1.0:
        g = _softmax(scaled, lambda s: 1.0 / s)
    else:
        g = _entmax_bisect(scaled, alpha, n_iter, lambda s: 1.0 / s)
    g = jnp.where(g > activation_threshold, g, 0.0)
    out = jnp.zeros_like(xt)
    for e in range(E):
        h = jnp.maximum(xt @ w1[e].T + b1[e], 0.0)
        y = h @ w2[e].T + b2[e]
        out = out + y * g[:, e:e + 1]
    return out.reshape(B, T, C)


if __name__ == "__main__":
    B, T = 2, 8
    n_embed, num_experts = 32, 8
    hidden = 4 * n_embed
    alpha, temperature, n_iter = 1.5, 1.0, 25

    key = jax.random.PRNGKey(0)
    k = jax.random.split(key, 7)
    x = jax.random.normal(k[0], (B, T, n_embed), jnp.float32)

    # Router weights a bit larger than nn.Linear init so entmax(alpha=1.5) yields real zeros.
    router_w = jax.random.uniform(k[1], (num_experts, n_embed), jnp.float32, -0.5, 0.5)
    router_b = jax.random.uniform(k[2], (num_experts,), jnp.float32, -0.1, 0.1)

    s1 = n_embed ** -0.5
    w1 = jax.random.uniform(k[3], (num_experts, hidden, n_embed), jnp.float32, -s1, s1)
    b1 = jax.random.uniform(k[4], (num_experts, hidden), jnp.float32, -s1, s1)
    s2 = hidden ** -0.5
    w2 = jax.random.uniform(k[5], (num_experts, n_embed, hidden), jnp.float32, -s2, s2)
    b2 = jax.random.uniform(k[6], (num_experts, n_embed), jnp.float32, -s2, s2)

    out = sparse_moe(x, router_w, router_b, w1, b1, w2, b2,
                     alpha=alpha, temperature=temperature, n_iter=n_iter)
    jax.block_until_ready(out)

    ref = reference_sparse_moe(x, router_w, router_b, w1, b1, w2, b2,
                               alpha=alpha, temperature=temperature, n_iter=n_iter)
    assert out.shape == (B, T, n_embed)
    max_err = float(jnp.max(jnp.abs(out - ref)))
    assert jnp.allclose(out, ref, atol=2e-3, rtol=2e-3), f"mismatch vs reference, max err {max_err}"

    print("KERNEL_OK")
</pallas_src>

<mosaic_0001>
module attributes {stable_mosaic.version = 11 : i64} {
  func.func @_moe_kernel_body(%arg0: i32, %arg1: memref<16x32xf32, #tpu.memory_space<vmem>>, %arg2: memref<32x8xf32, #tpu.memory_space<vmem>>, %arg3: memref<1x8xf32, #tpu.memory_space<vmem>>, %arg4: memref<32x1024xf32, #tpu.memory_space<vmem>>, %arg5: memref<1x1024xf32, #tpu.memory_space<vmem>>, %arg6: memref<8x1024xf32, #tpu.memory_space<vmem>>, %arg7: memref<1024x32xf32, #tpu.memory_space<vmem>>, %arg8: memref<8x32xf32, #tpu.memory_space<vmem>>, %arg9: memref<16x32xf32, #tpu.memory_space<vmem>>) attributes {dimension_semantics = [#tpu.dimension_semantics<parallel>], iteration_bounds = array<i64: 1>, scalar_prefetch = 0 : i64, scratch_operands = 0 : i64, tpu.core_type = #tpu.core_type<tc>, window_params = [{transform_indices = @transform_0, window_bounds = array<i64: 16, 32>}, {pipeline_mode = #tpu.pipeline_mode<synchronous>, transform_indices = @transform_1, window_bounds = array<i64: 32, 8>}, {pipeline_mode = #tpu.pipeline_mode<synchronous>, transform_indices = @transform_2, window_bounds = array<i64: 1, 8>}, {pipeline_mode = #tpu.pipeline_mode<synchronous>, transform_indices = @transform_3, window_bounds = array<i64: 32, 1024>}, {pipeline_mode = #tpu.pipeline_mode<synchronous>, transform_indices = @transform_4, window_bounds = array<i64: 1, 1024>}, {pipeline_mode = #tpu.pipeline_mode<synchronous>, transform_indices = @transform_5, window_bounds = array<i64: 8, 1024>}, {pipeline_mode = #tpu.pipeline_mode<synchronous>, transform_indices = @transform_6, window_bounds = array<i64: 1024, 32>}, {pipeline_mode = #tpu.pipeline_mode<synchronous>, transform_indices = @transform_7, window_bounds = array<i64: 8, 32>}, {transform_indices = @transform_8, window_bounds = array<i64: 16, 32>}]} {
    %c0 = arith.constant 0 : index
    %c0_0 = arith.constant 0 : index
    %0 = vector.load %arg1[%c0, %c0_0] : memref<16x32xf32, #tpu.memory_space<vmem>>, vector<16x32xf32>
    %c0_1 = arith.constant 0 : index
    %c0_2 = arith.constant 0 : index
    %1 = vector.load %arg2[%c0_1, %c0_2] : memref<32x8xf32, #tpu.memory_space<vmem>>, vector<32x8xf32>
    %cst = arith.constant dense<0.000000e+00> : vector<16x8xf32>
    %2 = tpu.matmul %0, %1, %cst {dimension_numbers = #tpu.dot_dimension_numbers<[1], [0], [0], [1], [0, 0, 1, 1], [], []>} : vector<16x32xf32>, vector<32x8xf32>, vector<16x8xf32> -> vector<16x8xf32>
    %c0_3 = arith.constant 0 : index
    %c0_4 = arith.constant 0 : index
    %3 = vector.load %arg3[%c0_3, %c0_4] : memref<1x8xf32, #tpu.memory_space<vmem>>, vector<1x8xf32>
    %4 = vector.broadcast %3 : vector<1x8xf32> to vector<16x8xf32>
    %5 = arith.addf %2, %4 : vector<16x8xf32>
    %cst_5 = arith.constant 1.000000e+00 : f32
    %6 = vector.broadcast %cst_5 : f32 to vector<16x8xf32>
    %7 = arith.mulf %5, %6 : vector<16x8xf32>
    %cst_6 = arith.constant 5.000000e-01 : f32
    %8 = vector.broadcast %cst_6 : f32 to vector<16x8xf32>
    %9 = arith.mulf %7, %8 : vector<16x8xf32>
    %cst_7 = arith.constant dense<0xFF800000> : vector<16xf32>
    %10 = vector.multi_reduction <maximumf>, %9, %cst_7 [1] : vector<16x8xf32> to vector<16xf32>
    %11 = vector.shape_cast %10 : vector<16xf32> to vector<16x1xf32>
    %cst_8 = arith.constant 1.000000e+00 : f32
    %12 = vector.broadcast %cst_8 : f32 to vector<16x1xf32>
    %13 = arith.subf %11, %12 : vector<16x1xf32>
    %cst_9 = arith.constant 0.353553385 : f32
    %14 = vector.broadcast %cst_9 : f32 to vector<16x1xf32>
    %15 = arith.subf %11, %14 : vector<16x1xf32>
    %16 = vector.broadcast %13 : vector<16x1xf32> to vector<16x8xf32>
    %17 = arith.subf %9, %16 : vector<16x8xf32>
    %cst_10 = arith.constant 0.000000e+00 : f32
    %18 = vector.broadcast %cst_10 : f32 to vector<16x8xf32>
    %19 = arith.maximumf %17, %18 : vector<16x8xf32>
    %20 = arith.mulf %19, %19 : vector<16x8xf32>
    %cst_11 = arith.constant dense<0.000000e+00> : vector<16xf32>
    %21 = vector.multi_reduction <add>, %20, %cst_11 [1] : vector<16x8xf32> to vector<16xf32>
    %22 = vector.shape_cast %21 : vector<16xf32> to vector<16x1xf32>
    %cst_12 = arith.constant 1.000000e+00 : f32
    %23 = vector.broadcast %cst_12 : f32 to vector<16x1xf32>
    %24 = arith.subf %22, %23 : vector<16x1xf32>
    %25 = arith.subf %15, %13 : vector<16x1xf32>
    %cst_13 = arith.constant 5.000000e-01 : f32
    %26 = vector.broadcast %cst_13 : f32 to vector<16x1xf32>
    %27 = arith.mulf %25, %26 : vector<16x1xf32>
    %28 = arith.addf %13, %27 : vector<16x1xf32>
    %29 = vector.broadcast %28 : vector<16x1xf32> to vector<16x8xf32>
    %30 = arith.subf %9, %29 : vector<16x8xf32>
    %cst_14 = arith.constant 0.000000e+00 : f32
    %31 = vector.broadcast %cst_14 : f32 to vector<16x8xf32>
    %32 = arith.maximumf %30, %31 : vector<16x8xf32>
    %33 = arith.mulf %32, %32 : vector<16x8xf32>
    %cst_15 = arith.constant dense<0.000000e+00> : vector<16xf32>
    %34 = vector.multi_reduction <add>, %33, %cst_15 [1] : vector<16x8xf32> to vector<16xf32>
    %35 = vector.shape_cast %34 : vector<16xf32> to vector<16x1xf32>
    %cst_16 = arith.constant 1.000000e+00 : f32
    %36 = vector.broadcast %cst_16 : f32 to vector<16x1xf32>
    %37 = arith.subf %35, %36 : vector<16x1xf32>
    %38 = arith.mulf %37, %24 : vector<16x1xf32>
    %cst_17 = arith.constant 0.000000e+00 : f32
    %39 = vector.broadcast %cst_17 : f32 to vector<16x1xf32>
    %40 = arith.cmpf oge, %38, %39 : vector<16x1xf32>
    %41 = arith.select %40, %28, %13 : vector<16x1xi1>, vector<16x1xf32>
    %cst_18 = arith.constant 5.000000e-01 : f32
    %42 = vector.broadcast %cst_18 : f32 to vector<16x1xf32>
    %43 = arith.mulf %27, %42 : vector<16x1xf32>
    %44 = arith.addf %41, %43 : vector<16x1xf32>
    %45 = vector.broadcast %44 : vector<16x1xf32> to vector<16x8xf32>
    %46 = arith.subf %9, %45 : vector<16x8xf32>
    %cst_19 = arith.constant 0.000000e+00 : f32
    %47 = vector.broadcast %cst_19 : f32 to vector<16x8xf32>
    %48 = arith.maximumf %46, %47 : vector<16x8xf32>
    %49 = arith.mulf %48, %48 : vector<16x8xf32>
    %cst_20 = arith.constant dense<0.000000e+00> : vector<16xf32>
    %50 = vector.multi_reduction <add>, %49, %cst_20 [1] : vector<16x8xf32> to vector<16xf32>
    %51 = vector.shape_cast %50 : vector<16xf32> to vector<16x1xf32>
    %cst_21 = arith.constant 1.000000e+00 : f32
    %52 = vector.broadcast %cst_21 : f32 to vector<16x1xf32>
    %53 = arith.subf %51, %52 : vector<16x1xf32>
    %54 = arith.mulf %53, %24 : vector<16x1xf32>
    %cst_22 = arith.constant 0.000000e+00 : f32
    %55 = vector.broadcast %cst_22 : f32 to vector<16x1xf32>
    %56 = arith.cmpf oge, %54, %55 : vector<16x1xf32>
    %57 = arith.select %56, %44, %41 : vector<16x1xi1>, vector<16x1xf32>
    %cst_23 = arith.constant 5.000000e-01 : f32
    %58 = vector.broadcast %cst_23 : f32 to vector<16x1xf32>
    %59 = arith.mulf %43, %58 : vector<16x1xf32>
    %60 = arith.addf %57, %59 : vector<16x1xf32>
    %61 = vector.broadcast %60 : vector<16x1xf32> to vector<16x8xf32>
    %62 = arith.subf %9, %61 : vector<16x8xf32>
    %cst_24 = arith.constant 0.000000e+00 : f32
    %63 = vector.broadcast %cst_24 : f32 to vector<16x8xf32>
    %64 = arith.maximumf %62, %63 : vector<16x8xf32>
    %65 = arith.mulf %64, %64 : vector<16x8xf32>
    %cst_25 = arith.constant dense<0.000000e+00> : vector<16xf32>
    %66 = vector.multi_reduction <add>, %65, %cst_25 [1] : vector<16x8xf32> to vector<16xf32>
    %67 = vector.shape_cast %66 : vector<16xf32> to vector<16x1xf32>
    %cst_26 = arith.constant 1.000000e+00 : f32
    %68 = vector.broadcast %cst_26 : f32 to vector<16x1xf32>
    %69 = arith.subf %67, %68 : vector<16x1xf32>
    %70 = arith.mulf %69, %24 : vector<16x1xf32>
    %cst_27 = arith.constant 0.000000e+00 : f32
    %71 = vector.broadcast %cst_27 : f32 to vector<16x1xf32>
    %72 = arith.cmpf oge, %70, %71 : vector<16x1xf32>
    %73 = arith.select %72, %60, %57 : vector<16x1xi1>, vector<16x1xf32>
    %cst_28 = arith.constant 5.000000e-01 : f32
    %74 = vector.broadcast %cst_28 : f32 to vector<16x1xf32>
    %75 = arith.mulf %59, %74 : vector<16x1xf32>
    %76 = arith.addf %73, %75 : vector<16x1xf32>
    %77 = vector.broadcast %76 : vector<16x1xf32> to vector<16x8xf32>
    %78 = arith.subf %9, %77 : vector<16x8xf32>
    %cst_29 = arith.constant 0.000000e+00 : f32
    %79 = vector.broadcast %cst_29 : f32 to vector<16x8xf32>
    %80 = arith.maximumf %78, %79 : vector<16x8xf32>
    %81 = arith.mulf %80, %80 : vector<16x8xf32>
    %cst_30 = arith.constant dense<0.000000e+00> : vector<16xf32>
    %82 = vector.multi_reduction <add>, %81, %cst_30 [1] : vector<16x8xf32> to vector<16xf32>
    %83 = vector.shape_cast %82 : vector<16xf32> to vector<16x1xf32>
    %cst_31 = arith.constant 1.000000e+00 : f32
    %84 = vector.broadcast %cst_31 : f32 to vector<16x1xf32>
    %85 = arith.subf %83, %84 : vector<16x1xf32>
    %86 = arith.mulf %85, %24 : vector<16x1xf32>
    %cst_32 = arith.constant 0.000000e+00 : f32
    %87 = vector.broadcast %cst_32 : f32 to vector<16x1xf32>
    %88 = arith.cmpf oge, %86, %87 : vector<16x1xf32>
    %89 = arith.select %88, %76, %73 : vector<16x1xi1>, vector<16x1xf32>
    %cst_33 = arith.constant 5.000000e-01 : f32
    %90 = vector.broadcast %cst_33 : f32 to vector<16x1xf32>
    %91 = arith.mulf %75, %90 : vector<16x1xf32>
    %92 = arith.addf %89, %91 : vector<16x1xf32>
    %93 = vector.broadcast %92 : vector<16x1xf32> to vector<16x8xf32>
    %94 = arith.subf %9, %93 : vector<16x8xf32>
    %cst_34 = arith.constant 0.000000e+00 : f32
    %95 = vector.broadcast %cst_34 : f32 to vector<16x8xf32>
    %96 = arith.maximumf %94, %95 : vector<16x8xf32>
    %97 = arith.mulf %96, %96 : vector<16x8xf32>
    %cst_35 = arith.constant dense<0.000000e+00> : vector<16xf32>
    %98 = vector.multi_reduction <add>, %97, %cst_35 [1] : vector<16x8xf32> to vector<16xf32>
    %99 = vector.shape_cast %98 : vector<16xf32> to vector<16x1xf32>
    %cst_36 = arith.constant 1.000000e+00 : f32
    %100 = vector.broadcast %cst_36 : f32 to vector<16x1xf32>
    %101 = arith.subf %99, %100 : vector<16x1xf32>
    %102 = arith.mulf %101, %24 : vector<16x1xf32>
    %cst_37 = arith.constant 0.000000e+00 : f32
    %103 = vector.broadcast %cst_37 : f32 to vector<16x1xf32>
    %104 = arith.cmpf oge, %102, %103 : vector<16x1xf32>
    %105 = arith.select %104, %92, %89 : vector<16x1xi1>, vector<16x1xf32>
    %cst_38 = arith.constant 5.000000e-01 : f32
    %106 = vector.broadcast %cst_38 : f32 to vector<16x1xf32>
    %107 = arith.mulf %91, %106 : vector<16x1xf32>
    %108 = arith.addf %105, %107 : vector<16x1xf32>
    %109 = vector.broadcast %108 : vector<16x1xf32> to vector<16x8xf32>
    %110 = arith.subf %9, %109 : vector<16x8xf32>
    %cst_39 = arith.constant 0.000000e+00 : f32
    %111 = vector.broadcast %cst_39 : f32 to vector<16x8xf32>
    %112 = arith.maximumf %110, %111 : vector<16x8xf32>
    %113 = arith.mulf %112, %112 : vector<16x8xf32>
    %cst_40 = arith.constant dense<0.000000e+00> : vector<16xf32>
    %114 = vector.multi_reduction <add>, %113, %cst_40 [1] : vector<16x8xf32> to vector<16xf32>
    %115 = vector.shape_cast %114 : vector<16xf32> to vector<16x1xf32>
    %cst_41 = arith.constant 1.000000e+00 : f32
    %116 = vector.broadcast %cst_41 : f32 to vector<16x1xf32>
    %117 = arith.subf %115, %116 : vector<16x1xf32>
    %118 = arith.mulf %117, %24 : vector<16x1xf32>
    %cst_42 = arith.constant 0.000000e+00 : f32
    %119 = vector.broadcast %cst_42 : f32 to vector<16x1xf32>
    %120 = arith.cmpf oge, %118, %119 : vector<16x1xf32>
    %121 = arith.select %120, %108, %105 : vector<16x1xi1>, vector<16x1xf32>
    %cst_43 = arith.constant 5.000000e-01 : f32
    %122 = vector.broadcast %cst_43 : f32 to vector<16x1xf32>
    %123 = arith.mulf %107, %122 : vector<16x1xf32>
    %124 = arith.addf %121, %123 : vector<16x1xf32>
    %125 = vector.broadcast %124 : vector<16x1xf32> to vector<16x8xf32>
    %126 = arith.subf %9, %125 : vector<16x8xf32>
    %cst_44 = arith.constant 0.000000e+00 : f32
    %127 = vector.broadcast %cst_44 : f32 to vector<16x8xf32>
    %128 = arith.maximumf %126, %127 : vector<16x8xf32>
    %129 = arith.mulf %128, %128 : vector<16x8xf32>
    %cst_45 = arith.constant dense<0.000000e+00> : vector<16xf32>
    %130 = vector.multi_reduction <add>, %129, %cst_45 [1] : vector<16x8xf32> to vector<16xf32>
    %131 = vector.shape_cast %130 : vector<16xf32> to vector<16x1xf32>
    %cst_46 = arith.constant 1.000000e+00 : f32
    %132 = vector.broadcast %cst_46 : f32 to vector<16x1xf32>
    %133 = arith.subf %131, %132 : vector<16x1xf32>
    %134 = arith.mulf %133, %24 : vector<16x1xf32>
    %cst_47 = arith.constant 0.000000e+00 : f32
    %135 = vector.broadcast %cst_47 : f32 to vector<16x1xf32>
    %136 = arith.cmpf oge, %134, %135 : vector<16x1xf32>
    %137 = arith.select %136, %124, %121 : vector<16x1xi1>, vector<16x1xf32>
    %cst_48 = arith.constant 5.000000e-01 : f32
    %138 = vector.broadcast %cst_48 : f32 to vector<16x1xf32>
    %139 = arith.mulf %123, %138 : vector<16x1xf32>
    %140 = arith.addf %137, %139 : vector<16x1xf32>
    %141 = vector.broadcast %140 : vector<16x1xf32> to vector<16x8xf32>
    %142 = arith.subf %9, %141 : vector<16x8xf32>
    %cst_49 = arith.constant 0.000000e+00 : f32
    %143 = vector.broadcast %cst_49 : f32 to vector<16x8xf32>
    %144 = arith.maximumf %142, %143 : vector<16x8xf32>
    %145 = arith.mulf %144, %144 : vector<16x8xf32>
    %cst_50 = arith.constant dense<0.000000e+00> : vector<16xf32>
    %146 = vector.multi_reduction <add>, %145, %cst_50 [1] : vector<16x8xf32> to vector<16xf32>
    %147 = vector.shape_cast %146 : vector<16xf32> to vector<16x1xf32>
    %cst_51 = arith.constant 1.000000e+00 : f32
    %148 = vector.broadcast %cst_51 : f32 to vector<16x1xf32>
    %149 = arith.subf %147, %148 : vector<16x1xf32>
    %150 = arith.mulf %149, %24 : vector<16x1xf32>
    %cst_52 = arith.constant 0.000000e+00 : f32
    %151 = vector.broadcast %cst_52 : f32 to vector<16x1xf32>
    %152 = arith.cmpf oge, %150, %151 : vector<16x1xf32>
    %153 = arith.select %152, %140, %137 : vector<16x1xi1>, vector<16x1xf32>
    %cst_53 = arith.constant 5.000000e-01 : f32
    %154 = vector.broadcast %cst_53 : f32 to vector<16x1xf32>
    %155 = arith.mulf %139, %154 : vector<16x1xf32>
    %156 = arith.addf %153, %155 : vector<16x1xf32>
    %157 = vector.broadcast %156 : vector<16x1xf32> to vector<16x8xf32>
    %158 = arith.subf %9, %157 : vector<16x8xf32>
    %cst_54 = arith.constant 0.000000e+00 : f32
    %159 = vector.broadcast %cst_54 : f32 to vector<16x8xf32>
    %160 = arith.maximumf %158, %159 : vector<16x8xf32>
    %161 = arith.mulf %160, %160 : vector<16x8xf32>
    %cst_55 = arith.constant dense<0.000000e+00> : vector<16xf32>
    %162 = vector.multi_reduction <add>, %161, %cst_55 [1] : vector<16x8xf32> to vector<16xf32>
    %163 = vector.shape_cast %162 : vector<16xf32> to vector<16x1xf32>
    %cst_56 = arith.constant 1.000000e+00 : f32
    %164 = vector.broadcast %cst_56 : f32 to vector<16x1xf32>
    %165 = arith.subf %163, %164 : vector<16x1xf32>
    %166 = arith.mulf %165, %24 : vector<16x1xf32>
    %cst_57 = arith.constant 0.000000e+00 : f32
    %167 = vector.broadcast %cst_57 : f32 to vector<16x1xf32>
    %168 = arith.cmpf oge, %166, %167 : vector<16x1xf32>
    %169 = arith.select %168, %156, %153 : vector<16x1xi1>, vector<16x1xf32>
    %cst_58 = arith.constant 5.000000e-01 : f32
    %170 = vector.broadcast %cst_58 : f32 to vector<16x1xf32>
    %171 = arith.mulf %155, %170 : vector<16x1xf32>
    %172 = arith.addf %169, %171 : vector<16x1xf32>
    %173 = vector.broadcast %172 : vector<16x1xf32> to vector<16x8xf32>
    %174 = arith.subf %9, %173 : vector<16x8xf32>
    %cst_59 = arith.constant 0.000000e+00 : f32
    %175 = vector.broadcast %cst_59 : f32 to vector<16x8xf32>
    %176 = arith.maximumf %174, %175 : vector<16x8xf32>
    %177 = arith.mulf %176, %176 : vector<16x8xf32>
    %cst_60 = arith.constant dense<0.000000e+00> : vector<16xf32>
    %178 = vector.multi_reduction <add>, %177, %cst_60 [1] : vector<16x8xf32> to vector<16xf32>
    %179 = vector.shape_cast %178 : vector<16xf32> to vector<16x1xf32>
    %cst_61 = arith.constant 1.000000e+00 : f32
    %180 = vector.broadcast %cst_61 : f32 to vector<16x1xf32>
    %181 = arith.subf %179, %180 : vector<16x1xf32>
    %182 = arith.mulf %181, %24 : vector<16x1xf32>
    %cst_62 = arith.constant 0.000000e+00 : f32
    %183 = vector.broadcast %cst_62 : f32 to vector<16x1xf32>
    %184 = arith.cmpf oge, %182, %183 : vector<16x1xf32>
    %185 = arith.select %184, %172, %169 : vector<16x1xi1>, vector<16x1xf32>
    %cst_63 = arith.constant 5.000000e-01 : f32
    %186 = vector.broadcast %cst_63 : f32 to vector<16x1xf32>
    %187 = arith.mulf %171, %186 : vector<16x1xf32>
    %188 = arith.addf %185, %187 : vector<16x1xf32>
    %189 = vector.broadcast %188 : vector<16x1xf32> to vector<16x8xf32>
    %190 = arith.subf %9, %189 : vector<16x8xf32>
    %cst_64 = arith.constant 0.000000e+00 : f32
    %191 = vector.broadcast %cst_64 : f32 to vector<16x8xf32>
    %192 = arith.maximumf %190, %191 : vector<16x8xf32>
    %193 = arith.mulf %192, %192 : vector<16x8xf32>
    %cst_65 = arith.constant dense<0.000000e+00> : vector<16xf32>
    %194 = vector.multi_reduction <add>, %193, %cst_65 [1] : vector<16x8xf32> to vector<16xf32>
    %195 = vector.shape_cast %194 : vector<16xf32> to vector<16x1xf32>
    %cst_66 = arith.constant 1.000000e+00 : f32
    %196 = vector.broadcast %cst_66 : f32 to vector<16x1xf32>
    %197 = arith.subf %195, %196 : vector<16x1xf32>
    %198 = arith.mulf %197, %24 : vector<16x1xf32>
    %cst_67 = arith.constant 0.000000e+00 : f32
    %199 = vector.broadcast %cst_67 : f32 to vector<16x1xf32>
    %200 = arith.cmpf oge, %198, %199 : vector<16x1xf32>
    %201 = arith.select %200, %188, %185 : vector<16x1xi1>, vector<16x1xf32>
    %cst_68 = arith.constant 5.000000e-01 : f32
    %202 = vector.broadcast %cst_68 : f32 to vector<16x1xf32>
    %203 = arith.mulf %187, %202 : vector<16x1xf32>
    %204 = arith.addf %201, %203 : vector<16x1xf32>
    %205 = vector.broadcast %204 : vector<16x1xf32> to vector<16x8xf32>
    %206 = arith.subf %9, %205 : vector<16x8xf32>
    %cst_69 = arith.constant 0.000000e+00 : f32
    %207 = vector.broadcast %cst_69 : f32 to vector<16x8xf32>
    %208 = arith.maximumf %206, %207 : vector<16x8xf32>
    %209 = arith.mulf %208, %208 : vector<16x8xf32>
    %cst_70 = arith.constant dense<0.000000e+00> : vector<16xf32>
    %210 = vector.multi_reduction <add>, %209, %cst_70 [1] : vector<16x8xf32> to vector<16xf32>
    %211 = vector.shape_cast %210 : vector<16xf32> to vector<16x1xf32>
    %cst_71 = arith.constant 1.000000e+00 : f32
    %212 = vector.broadcast %cst_71 : f32 to vector<16x1xf32>
    %213 = arith.subf %211, %212 : vector<16x1xf32>
    %214 = arith.mulf %213, %24 : vector<16x1xf32>
    %cst_72 = arith.constant 0.000000e+00 : f32
    %215 = vector.broadcast %cst_72 : f32 to vector<16x1xf32>
    %216 = arith.cmpf oge, %214, %215 : vector<16x1xf32>
    %217 = arith.select %216, %204, %201 : vector<16x1xi1>, vector<16x1xf32>
    %cst_73 = arith.constant 5.000000e-01 : f32
    %218 = vector.broadcast %cst_73 : f32 to vector<16x1xf32>
    %219 = arith.mulf %203, %218 : vector<16x1xf32>
    %220 = arith.addf %217, %219 : vector<16x1xf32>
    %221 = vector.broadcast %220 : vector<16x1xf32> to vector<16x8xf32>
    %222 = arith.subf %9, %221 : vector<16x8xf32>
    %cst_74 = arith.constant 0.000000e+00 : f32
    %223 = vector.broadcast %cst_74 : f32 to vector<16x8xf32>
    %224 = arith.maximumf %222, %223 : vector<16x8xf32>
    %225 = arith.mulf %224, %224 : vector<16x8xf32>
    %cst_75 = arith.constant dense<0.000000e+00> : vector<16xf32>
    %226 = vector.multi_reduction <add>, %225, %cst_75 [1] : vector<16x8xf32> to vector<16xf32>
    %227 = vector.shape_cast %226 : vector<16xf32> to vector<16x1xf32>
    %cst_76 = arith.constant 1.000000e+00 : f32
    %228 = vector.broadcast %cst_76 : f32 to vector<16x1xf32>
    %229 = arith.subf %227, %228 : vector<16x1xf32>
    %230 = arith.mulf %229, %24 : vector<16x1xf32>
    %cst_77 = arith.constant 0.000000e+00 : f32
    %231 = vector.broadcast %cst_77 : f32 to vector<16x1xf32>
    %232 = arith.cmpf oge, %230, %231 : vector<16x1xf32>
    %233 = arith.select %232, %220, %217 : vector<16x1xi1>, vector<16x1xf32>
    %cst_78 = arith.constant 5.000000e-01 : f32
    %234 = vector.broadcast %cst_78 : f32 to vector<16x1xf32>
    %235 = arith.mulf %219, %234 : vector<16x1xf32>
    %236 = arith.addf %233, %235 : vector<16x1xf32>
    %237 = vector.broadcast %236 : vector<16x1xf32> to vector<16x8xf32>
    %238 = arith.subf %9, %237 : vector<16x8xf32>
    %cst_79 = arith.constant 0.000000e+00 : f32
    %239 = vector.broadcast %cst_79 : f32 to vector<16x8xf32>
    %240 = arith.maximumf %238, %239 : vector<16x8xf32>
    %241 = arith.mulf %240, %240 : vector<16x8xf32>
    %cst_80 = arith.constant dense<0.000000e+00> : vector<16xf32>
    %242 = vector.multi_reduction <add>, %241, %cst_80 [1] : vector<16x8xf32> to vector<16xf32>
    %243 = vector.shape_cast %242 : vector<16xf32> to vector<16x1xf32>
    %cst_81 = arith.constant 1.000000e+00 : f32
    %244 = vector.broadcast %cst_81 : f32 to vector<16x1xf32>
    %245 = arith.subf %243, %244 : vector<16x1xf32>
    %246 = arith.mulf %245, %24 : vector<16x1xf32>
    %cst_82 = arith.constant 0.000000e+00 : f32
    %247 = vector.broadcast %cst_82 : f32 to vector<16x1xf32>
    %248 = arith.cmpf oge, %246, %247 : vector<16x1xf32>
    %249 = arith.select %248, %236, %233 : vector<16x1xi1>, vector<16x1xf32>
    %cst_83 = arith.constant 5.000000e-01 : f32
    %250 = vector.broadcast %cst_83 : f32 to vector<16x1xf32>
    %251 = arith.mulf %235, %250 : vector<16x1xf32>
    %252 = arith.addf %249, %251 : vector<16x1xf32>
    %253 = vector.broadcast %252 : vector<16x1xf32> to vector<16x8xf32>
    %254 = arith.subf %9, %253 : vector<16x8xf32>
    %cst_84 = arith.constant 0.000000e+00 : f32
    %255 = vector.broadcast %cst_84 : f32 to vector<16x8xf32>
    %256 = arith.maximumf %254, %255 : vector<16x8xf32>
    %257 = arith.mulf %256, %256 : vector<16x8xf32>
    %cst_85 = arith.constant dense<0.000000e+00> : vector<16xf32>
    %258 = vector.multi_reduction <add>, %257, %cst_85 [1] : vector<16x8xf32> to vector<16xf32>
    %259 = vector.shape_cast %258 : vector<16xf32> to vector<16x1xf32>
    %cst_86 = arith.constant 1.000000e+00 : f32
    %260 = vector.broadcast %cst_86 : f32 to vector<16x1xf32>
    %261 = arith.subf %259, %260 : vector<16x1xf32>
    %262 = arith.mulf %261, %24 : vector<16x1xf32>
    %cst_87 = arith.constant 0.000000e+00 : f32
    %263 = vector.broadcast %cst_87 : f32 to vector<16x1xf32>
    %264 = arith.cmpf oge, %262, %263 : vector<16x1xf32>
    %265 = arith.select %264, %252, %249 : vector<16x1xi1>, vector<16x1xf32>
    %cst_88 = arith.constant 5.000000e-01 : f32
    %266 = vector.broadcast %cst_88 : f32 to vector<16x1xf32>
    %267 = arith.mulf %251, %266 : vector<16x1xf32>
    %268 = arith.addf %265, %267 : vector<16x1xf32>
    %269 = vector.broadcast %268 : vector<16x1xf32> to vector<16x8xf32>
    %270 = arith.subf %9, %269 : vector<16x8xf32>
    %cst_89 = arith.constant 0.000000e+00 : f32
    %271 = vector.broadcast %cst_89 : f32 to vector<16x8xf32>
    %272 = arith.maximumf %270, %271 : vector<16x8xf32>
    %273 = arith.mulf %272, %272 : vector<16x8xf32>
    %cst_90 = arith.constant dense<0.000000e+00> : vector<16xf32>
    %274 = vector.multi_reduction <add>, %273, %cst_90 [1] : vector<16x8xf32> to vector<16xf32>
    %275 = vector.shape_cast %274 : vector<16xf32> to vector<16x1xf32>
    %cst_91 = arith.constant 1.000000e+00 : f32
    %276 = vector.broadcast %cst_91 : f32 to vector<16x1xf32>
    %277 = arith.subf %275, %276 : vector<16x1xf32>
    %278 = arith.mulf %277, %24 : vector<16x1xf32>
    %cst_92 = arith.constant 0.000000e+00 : f32
    %279 = vector.broadcast %cst_92 : f32 to vector<16x1xf32>
    %280 = arith.cmpf oge, %278, %279 : vector<16x1xf32>
    %281 = arith.select %280, %268, %265 : vector<16x1xi1>, vector<16x1xf32>
    %cst_93 = arith.constant 5.000000e-01 : f32
    %282 = vector.broadcast %cst_93 : f32 to vector<16x1xf32>
    %283 = arith.mulf %267, %282 : vector<16x1xf32>
    %284 = arith.addf %281, %283 : vector<16x1xf32>
    %285 = vector.broadcast %284 : vector<16x1xf32> to vector<16x8xf32>
    %286 = arith.subf %9, %285 : vector<16x8xf32>
    %cst_94 = arith.constant 0.000000e+00 : f32
    %287 = vector.broadcast %cst_94 : f32 to vector<16x8xf32>
    %288 = arith.maximumf %286, %287 : vector<16x8xf32>
    %289 = arith.mulf %288, %288 : vector<16x8xf32>
    %cst_95 = arith.constant dense<0.000000e+00> : vector<16xf32>
    %290 = vector.multi_reduction <add>, %289, %cst_95 [1] : vector<16x8xf32> to vector<16xf32>
    %291 = vector.shape_cast %290 : vector<16xf32> to vector<16x1xf32>
    %cst_96 = arith.constant 1.000000e+00 : f32
    %292 = vector.broadcast %cst_96 : f32 to vector<16x1xf32>
    %293 = arith.subf %291, %292 : vector<16x1xf32>
    %294 = arith.mulf %293, %24 : vector<16x1xf32>
    %cst_97 = arith.constant 0.000000e+00 : f32
    %295 = vector.broadcast %cst_97 : f32 to vector<16x1xf32>
    %296 = arith.cmpf oge, %294, %295 : vector<16x1xf32>
    %297 = arith.select %296, %284, %281 : vector<16x1xi1>, vector<16x1xf32>
    %cst_98 = arith.constant 5.000000e-01 : f32
    %298 = vector.broadcast %cst_98 : f32 to vector<16x1xf32>
    %299 = arith.mulf %283, %298 : vector<16x1xf32>
    %300 = arith.addf %297, %299 : vector<16x1xf32>
    %301 = vector.broadcast %300 : vector<16x1xf32> to vector<16x8xf32>
    %302 = arith.subf %9, %301 : vector<16x8xf32>
    %cst_99 = arith.constant 0.000000e+00 : f32
    %303 = vector.broadcast %cst_99 : f32 to vector<16x8xf32>
    %304 = arith.maximumf %302, %303 : vector<16x8xf32>
    %305 = arith.mulf %304, %304 : vector<16x8xf32>
    %cst_100 = arith.constant dense<0.000000e+00> : vector<16xf32>
    %306 = vector.multi_reduction <add>, %305, %cst_100 [1] : vector<16x8xf32> to vector<16xf32>
    %307 = vector.shape_cast %306 : vector<16xf32> to vector<16x1xf32>
    %cst_101 = arith.constant 1.000000e+00 : f32
    %308 = vector.broadcast %cst_101 : f32 to vector<16x1xf32>
    %309 = arith.subf %307, %308 : vector<16x1xf32>
    %310 = arith.mulf %309, %24 : vector<16x1xf32>
    %cst_102 = arith.constant 0.000000e+00 : f32
    %311 = vector.broadcast %cst_102 : f32 to vector<16x1xf32>
    %312 = arith.cmpf oge, %310, %311 : vector<16x1xf32>
    %313 = arith.select %312, %300, %297 : vector<16x1xi1>, vector<16x1xf32>
    %cst_103 = arith.constant 5.000000e-01 : f32
    %314 = vector.broadcast %cst_103 : f32 to vector<16x1xf32>
    %315 = arith.mulf %299, %314 : vector<16x1xf32>
    %316 = arith.addf %313, %315 : vector<16x1xf32>
    %317 = vector.broadcast %316 : vector<16x1xf32> to vector<16x8xf32>
    %318 = arith.subf %9, %317 : vector<16x8xf32>
    %cst_104 = arith.constant 0.000000e+00 : f32
    %319 = vector.broadcast %cst_104 : f32 to vector<16x8xf32>
    %320 = arith.maximumf %318, %319 : vector<16x8xf32>
    %321 = arith.mulf %320, %320 : vector<16x8xf32>
    %cst_105 = arith.constant dense<0.000000e+00> : vector<16xf32>
    %322 = vector.multi_reduction <add>, %321, %cst_105 [1] : vector<16x8xf32> to vector<16xf32>
    %323 = vector.shape_cast %322 : vector<16xf32> to vector<16x1xf32>
    %cst_106 = arith.constant 1.000000e+00 : f32
    %324 = vector.broadcast %cst_106 : f32 to vector<16x1xf32>
    %325 = arith.subf %323, %324 : vector<16x1xf32>
    %326 = arith.mulf %325, %24 : vector<16x1xf32>
    %cst_107 = arith.constant 0.000000e+00 : f32
    %327 = vector.broadcast %cst_107 : f32 to vector<16x1xf32>
    %328 = arith.cmpf oge, %326, %327 : vector<16x1xf32>
    %329 = arith.select %328, %316, %313 : vector<16x1xi1>, vector<16x1xf32>
    %cst_108 = arith.constant 5.000000e-01 : f32
    %330 = vector.broadcast %cst_108 : f32 to vector<16x1xf32>
    %331 = arith.mulf %315, %330 : vector<16x1xf32>
    %332 = arith.addf %329, %331 : vector<16x1xf32>
    %333 = vector.broadcast %332 : vector<16x1xf32> to vector<16x8xf32>
    %334 = arith.subf %9, %333 : vector<16x8xf32>
    %cst_109 = arith.constant 0.000000e+00 : f32
    %335 = vector.broadcast %cst_109 : f32 to vector<16x8xf32>
    %336 = arith.maximumf %334, %335 : vector<16x8xf32>
    %337 = arith.mulf %336, %336 : vector<16x8xf32>
    %cst_110 = arith.constant dense<0.000000e+00> : vector<16xf32>
    %338 = vector.multi_reduction <add>, %337, %cst_110 [1] : vector<16x8xf32> to vector<16xf32>
    %339 = vector.shape_cast %338 : vector<16xf32> to vector<16x1xf32>
    %cst_111 = arith.constant 1.000000e+00 : f32
    %340 = vector.broadcast %cst_111 : f32 to vector<16x1xf32>
    %341 = arith.subf %339, %340 : vector<16x1xf32>
    %342 = arith.mulf %341, %24 : vector<16x1xf32>
    %cst_112 = arith.constant 0.000000e+00 : f32
    %343 = vector.broadcast %cst_112 : f32 to vector<16x1xf32>
    %344 = arith.cmpf oge, %342, %343 : vector<16x1xf32>
    %345 = arith.select %344, %332, %329 : vector<16x1xi1>, vector<16x1xf32>
    %cst_113 = arith.constant 5.000000e-01 : f32
    %346 = vector.broadcast %cst_113 : f32 to vector<16x1xf32>
    %347 = arith.mulf %331, %346 : vector<16x1xf32>
    %348 = arith.addf %345, %347 : vector<16x1xf32>
    %349 = vector.broadcast %348 : vector<16x1xf32> to vector<16x8xf32>
    %350 = arith.subf %9, %349 : vector<16x8xf32>
    %cst_114 = arith.constant 0.000000e+00 : f32
    %351 = vector.broadcast %cst_114 : f32 to vector<16x8xf32>
    %352 = arith.maximumf %350, %351 : vector<16x8xf32>
    %353 = arith.mulf %352, %352 : vector<16x8xf32>
    %cst_115 = arith.constant dense<0.000000e+00> : vector<16xf32>
    %354 = vector.multi_reduction <add>, %353, %cst_115 [1] : vector<16x8xf32> to vector<16xf32>
    %355 = vector.shape_cast %354 : vector<16xf32> to vector<16x1xf32>
    %cst_116 = arith.constant 1.000000e+00 : f32
    %356 = vector.broadcast %cst_116 : f32 to vector<16x1xf32>
    %357 = arith.subf %355, %356 : vector<16x1xf32>
    %358 = arith.mulf %357, %24 : vector<16x1xf32>
    %cst_117 = arith.constant 0.000000e+00 : f32
    %359 = vector.broadcast %cst_117 : f32 to vector<16x1xf32>
    %360 = arith.cmpf oge, %358, %359 : vector<16x1xf32>
    %361 = arith.select %360, %348, %345 : vector<16x1xi1>, vector<16x1xf32>
    %cst_118 = arith.constant 5.000000e-01 : f32
    %362 = vector.broadcast %cst_118 : f32 to vector<16x1xf32>
    %363 = arith.mulf %347, %362 : vector<16x1xf32>
    %364 = arith.addf %361, %363 : vector<16x1xf32>
    %365 = vector.broadcast %364 : vector<16x1xf32> to vector<16x8xf32>
    %366 = arith.subf %9, %365 : vector<16x8xf32>
    %cst_119 = arith.constant 0.000000e+00 : f32
    %367 = vector.broadcast %cst_119 : f32 to vector<16x8xf32>
    %368 = arith.maximumf %366, %367 : vector<16x8xf32>
    %369 = arith.mulf %368, %368 : vector<16x8xf32>
    %cst_120 = arith.constant dense<0.000000e+00> : vector<16xf32>
    %370 = vector.multi_reduction <add>, %369, %cst_120 [1] : vector<16x8xf32> to vector<16xf32>
    %371 = vector.shape_cast %370 : vector<16xf32> to vector<16x1xf32>
    %cst_121 = arith.constant 1.000000e+00 : f32
    %372 = vector.broadcast %cst_121 : f32 to vector<16x1xf32>
    %373 = arith.subf %371, %372 : vector<16x1xf32>
    %374 = arith.mulf %373, %24 : vector<16x1xf32>
    %cst_122 = arith.constant 0.000000e+00 : f32
    %375 = vector.broadcast %cst_122 : f32 to vector<16x1xf32>
    %376 = arith.cmpf oge, %374, %375 : vector<16x1xf32>
    %377 = arith.select %376, %364, %361 : vector<16x1xi1>, vector<16x1xf32>
    %cst_123 = arith.constant 5.000000e-01 : f32
    %378 = vector.broadcast %cst_123 : f32 to vector<16x1xf32>
    %379 = arith.mulf %363, %378 : vector<16x1xf32>
    %380 = arith.addf %377, %379 : vector<16x1xf32>
    %381 = vector.broadcast %380 : vector<16x1xf32> to vector<16x8xf32>
    %382 = arith.subf %9, %381 : vector<16x8xf32>
    %cst_124 = arith.constant 0.000000e+00 : f32
    %383 = vector.broadcast %cst_124 : f32 to vector<16x8xf32>
    %384 = arith.maximumf %382, %383 : vector<16x8xf32>
    %385 = arith.mulf %384, %384 : vector<16x8xf32>
    %cst_125 = arith.constant dense<0.000000e+00> : vector<16xf32>
    %386 = vector.multi_reduction <add>, %385, %cst_125 [1] : vector<16x8xf32> to vector<16xf32>
    %387 = vector.shape_cast %386 : vector<16xf32> to vector<16x1xf32>
    %cst_126 = arith.constant 1.000000e+00 : f32
    %388 = vector.broadcast %cst_126 : f32 to vector<16x1xf32>
    %389 = arith.subf %387, %388 : vector<16x1xf32>
    %390 = arith.mulf %389, %24 : vector<16x1xf32>
    %cst_127 = arith.constant 0.000000e+00 : f32
    %391 = vector.broadcast %cst_127 : f32 to vector<16x1xf32>
    %392 = arith.cmpf oge, %390, %391 : vector<16x1xf32>
    %393 = arith.select %392, %380, %377 : vector<16x1xi1>, vector<16x1xf32>
    %cst_128 = arith.constant 5.000000e-01 : f32
    %394 = vector.broadcast %cst_128 : f32 to vector<16x1xf32>
    %395 = arith.mulf %379, %394 : vector<16x1xf32>
    %396 = arith.addf %393, %395 : vector<16x1xf32>
    %397 = vector.broadcast %396 : vector<16x1xf32> to vector<16x8xf32>
    %398 = arith.subf %9, %397 : vector<16x8xf32>
    %cst_129 = arith.constant 0.000000e+00 : f32
    %399 = vector.broadcast %cst_129 : f32 to vector<16x8xf32>
    %400 = arith.maximumf %398, %399 : vector<16x8xf32>
    %401 = arith.mulf %400, %400 : vector<16x8xf32>
    %cst_130 = arith.constant dense<0.000000e+00> : vector<16xf32>
    %402 = vector.multi_reduction <add>, %401, %cst_130 [1] : vector<16x8xf32> to vector<16xf32>
    %403 = vector.shape_cast %402 : vector<16xf32> to vector<16x1xf32>
    %cst_131 = arith.constant 1.000000e+00 : f32
    %404 = vector.broadcast %cst_131 : f32 to vector<16x1xf32>
    %405 = arith.subf %403, %404 : vector<16x1xf32>
    %406 = arith.mulf %405, %24 : vector<16x1xf32>
    %cst_132 = arith.constant 0.000000e+00 : f32
    %407 = vector.broadcast %cst_132 : f32 to vector<16x1xf32>
    %408 = arith.cmpf oge, %406, %407 : vector<16x1xf32>
    %409 = arith.select %408, %396, %393 : vector<16x1xi1>, vector<16x1xf32>
    %cst_133 = arith.constant 5.000000e-01 : f32
    %410 = vector.broadcast %cst_133 : f32 to vector<16x1xf32>
    %411 = arith.mulf %395, %410 : vector<16x1xf32>
    %412 = arith.addf %409, %411 : vector<16x1xf32>
    %413 = vector.broadcast %412 : vector<16x1xf32> to vector<16x8xf32>
    %414 = arith.subf %9, %413 : vector<16x8xf32>
    %cst_134 = arith.constant 0.000000e+00 : f32
    %415 = vector.broadcast %cst_134 : f32 to vector<16x8xf32>
    %416 = arith.maximumf %414, %415 : vector<16x8xf32>
    %417 = arith.mulf %416, %416 : vector<16x8xf32>
    %cst_135 = arith.constant dense<0.000000e+00> : vector<16xf32>
    %418 = vector.multi_reduction <add>, %417, %cst_135 [1] : vector<16x8xf32> to vector<16xf32>
    %419 = vector.shape_cast %418 : vector<16xf32> to vector<16x1xf32>
    %420 = tpu.reciprocal %419 {approx = true} : vector<16x1xf32> -> vector<16x1xf32>
    %421 = vector.broadcast %420 : vector<16x1xf32> to vector<16x8xf32>
    %422 = arith.mulf %417, %421 : vector<16x8xf32>
    %cst_136 = arith.constant 9.99999971E-10 : f32
    %423 = vector.broadcast %cst_136 : f32 to vector<16x8xf32>
    %424 = arith.cmpf ogt, %422, %423 : vector<16x8xf32>
    %cst_137 = arith.constant 0.000000e+00 : f32
    %425 = vector.broadcast %cst_137 : f32 to vector<16x8xf32>
    %426 = arith.select %424, %422, %425 : vector<16x8xi1>, vector<16x8xf32>
    %c0_138 = arith.constant 0 : index
    %c0_139 = arith.constant 0 : index
    %427 = vector.load %arg4[%c0_138, %c0_139] : memref<32x1024xf32, #tpu.memory_space<vmem>>, vector<32x1024xf32>
    %cst_140 = arith.constant dense<0.000000e+00> : vector<16x1024xf32>
    %428 = tpu.matmul %0, %427, %cst_140 {dimension_numbers = #tpu.dot_dimension_numbers<[1], [0], [0], [1], [0, 0, 1, 1], [], []>} : vector<16x32xf32>, vector<32x1024xf32>, vector<16x1024xf32> -> vector<16x1024xf32>
    %c0_141 = arith.constant 0 : index
    %c0_142 = arith.constant 0 : index
    %429 = vector.load %arg5[%c0_141, %c0_142] : memref<1x1024xf32, #tpu.memory_space<vmem>>, vector<1x1024xf32>
    %430 = vector.broadcast %429 : vector<1x1024xf32> to vector<16x1024xf32>
    %431 = arith.addf %428, %430 : vector<16x1024xf32>
    %cst_143 = arith.constant 0.000000e+00 : f32
    %432 = vector.broadcast %cst_143 : f32 to vector<16x1024xf32>
    %433 = arith.maximumf %431, %432 : vector<16x1024xf32>
    %c0_144 = arith.constant 0 : index
    %c0_145 = arith.constant 0 : index
    %434 = vector.load %arg6[%c0_144, %c0_145] : memref<8x1024xf32, #tpu.memory_space<vmem>>, vector<8x1024xf32>
    %cst_146 = arith.constant dense<0.000000e+00> : vector<16x1024xf32>
    %435 = tpu.matmul %426, %434, %cst_146 {dimension_numbers = #tpu.dot_dimension_numbers<[1], [0], [0], [1], [0, 0, 1, 1], [], []>} : vector<16x8xf32>, vector<8x1024xf32>, vector<16x1024xf32> -> vector<16x1024xf32>
    %436 = arith.mulf %433, %435 : vector<16x1024xf32>
    %c0_147 = arith.constant 0 : index
    %c0_148 = arith.constant 0 : index
    %437 = vector.load %arg7[%c0_147, %c0_148] : memref<1024x32xf32, #tpu.memory_space<vmem>>, vector<1024x32xf32>
    %cst_149 = arith.constant dense<0.000000e+00> : vector<16x32xf32>
    %438 = tpu.matmul %436, %437, %cst_149 {dimension_numbers = #tpu.dot_dimension_numbers<[1], [0], [0], [1], [0, 0, 1, 1], [], []>} : vector<16x1024xf32>, vector<1024x32xf32>, vector<16x32xf32> -> vector<16x32xf32>
    %c0_150 = arith.constant 0 : index
    %c0_151 = arith.constant 0 : index
    %439 = vector.load %arg8[%c0_150, %c0_151] : memref<8x32xf32, #tpu.memory_space<vmem>>, vector<8x32xf32>
    %cst_152 = arith.constant dense<0.000000e+00> : vector<16x32xf32>
    %440 = tpu.matmul %426, %439, %cst_152 {dimension_numbers = #tpu.dot_dimension_numbers<[1], [0], [0], [1], [0, 0, 1, 1], [], []>} : vector<16x8xf32>, vector<8x32xf32>, vector<16x32xf32> -> vector<16x32xf32>
    %441 = arith.addf %438, %440 : vector<16x32xf32>
    %c0_153 = arith.constant 0 : index
    %c0_154 = arith.constant 0 : index
    %442 = vector.load %arg9[%c0_153, %c0_154] : memref<16x32xf32, #tpu.memory_space<vmem>>, vector<16x32xf32>
    tpu.vector_store %arg9[%c0_153, %c0_154], %441 {strides = array<i32>} : memref<16x32xf32, #tpu.memory_space<vmem>>, vector<16x32xf32>,
    return
  }
  func.func @transform_0(%arg0: i32) -> (i32, i32) {
    %c0_i32 = arith.constant 0 : i32
    %c0_i32_0 = arith.constant 0 : i32
    return %arg0, %c0_i32 : i32, i32
  }
  func.func @transform_1(%arg0: i32) -> (i32, i32) {
    %c0_i32 = arith.constant 0 : i32
    %c0_i32_0 = arith.constant 0 : i32
    %c0_i32_1 = arith.constant 0 : i32
    return %c0_i32, %c0_i32_0 : i32, i32
  }
  func.func @transform_2(%arg0: i32) -> (i32, i32) {
    %c0_i32 = arith.constant 0 : i32
    %c0_i32_0 = arith.constant 0 : i32
    %c0_i32_1 = arith.constant 0 : i32
    return %c0_i32, %c0_i32_0 : i32, i32
  }
  func.func @transform_3(%arg0: i32) -> (i32, i32) {
    %c0_i32 = arith.constant 0 : i32
    %c0_i32_0 = arith.constant 0 : i32
    %c0_i32_1 = arith.constant 0 : i32
    return %c0_i32, %c0_i32_0 : i32, i32
  }
  func.func @transform_4(%arg0: i32) -> (i32, i32) {
    %c0_i32 = arith.constant 0 : i32
    %c0_i32_0 = arith.constant 0 : i32
    %c0_i32_1 = arith.constant 0 : i32
    return %c0_i32, %c0_i32_0 : i32, i32
  }
  func.func @transform_5(%arg0: i32) -> (i32, i32) {
    %c0_i32 = arith.constant 0 : i32
    %c0_i32_0 = arith.constant 0 : i32
    %c0_i32_1 = arith.constant 0 : i32
    return %c0_i32, %c0_i32_0 : i32, i32
  }
  func.func @transform_6(%arg0: i32) -> (i32, i32) {
    %c0_i32 = arith.constant 0 : i32
    %c0_i32_0 = arith.constant 0 : i32
    %c0_i32_1 = arith.constant 0 : i32
    return %c0_i32, %c0_i32_0 : i32, i32
  }
  func.func @transform_7(%arg0: i32) -> (i32, i32) {
    %c0_i32 = arith.constant 0 : i32
    %c0_i32_0 = arith.constant 0 : i32
    %c0_i32_1 = arith.constant 0 : i32
    return %c0_i32, %c0_i32_0 : i32, i32
  }
  func.func @transform_8(%arg0: i32) -> (i32, i32) {
    %c0_i32 = arith.constant 0 : i32
    %c0_i32_0 = arith.constant 0 : i32
    return %arg0, %c0_i32 : i32, i32
  }
}

</mosaic_0001>

<llo_original>
// kernel: tpu_custom_call.1
$region0: #{tpu_custom_call.1}
  #allocation0 [shape = 'u32[]', space=smem, size = 0x4, offset = 0x4, fixed_abs, tag = 'smem constant byte address 0x4 - core index']
  #allocation1 [shape = 'u32[144,128]{1,0:T(1,128)}', space=vmem, size = 0x12000, scoped, tag = 'internal scratch']
  %s0 = inlined_call_operand.vmem [shape: f32[16,32], index: 0, kind: input, shape index: {}]
  %s1 = inlined_call_operand.vmem [shape: f32[32,8], index: 1, kind: input, shape index: {}]
  %s2 = inlined_call_operand.vmem [shape: f32[1,8], index: 2, kind: input, shape index: {}]
  %s3 = inlined_call_operand.vmem [shape: f32[32,1024], index: 3, kind: input, shape index: {}]
  %s4 = inlined_call_operand.vmem [shape: f32[1,1024], index: 4, kind: input, shape index: {}]
  %s5 = inlined_call_operand.vmem [shape: f32[8,1024], index: 5, kind: input, shape index: {}]
  %s6 = inlined_call_operand.vmem [shape: f32[1024,32], index: 6, kind: input, shape index: {}]
  %s7 = inlined_call_operand.vmem [shape: f32[8,32], index: 7, kind: input, shape index: {}]
  %s8 = inlined_call_operand.hbm [shape: f32[16,32], index: 8, kind: output, shape index: {}]
  %s9 = sld [smem:[#allocation0]]
  $region42: #{tpu_custom_call.1} parent=0
    _
  %s11 = ssub.s32 1, %s9
  %s12 = scalar_select 0, %s11, %s9
  $region1: #{tpu_custom_call.1} parent=0
    #allocation2 [shape = 'u8[8192]{0}', space=vmem, size = 0x2000, scoped, tag = 'output window, operand 0, single buffered']
    #allocation3 [shape = 's32[1]{0}', space=sflag, size = 0x4, scoped, tag = 'scoped memory for tpu_custom_call.1']
    %13 = vsyncpa [#allocation3], 0
    // Predicated region
    $region2: #{tpu_custom_call.1} parent=1 // pred_check
      _
    $region3: #{tpu_custom_call.1} parent=1 // pred_check_branch
      %15 = sbr.rel (0) target = $region5
    $region4: #{tpu_custom_call.1} parent=1 // pred_region
      _
    $region5: #{tpu_custom_call.1} parent=1 // pred_fallthru
      _
    // Predicated region
    $region6: #{tpu_custom_call.1} parent=1 // pred_check
      _
    $region7: #{tpu_custom_call.1} parent=1 // pred_check_branch
      %17 = sbr.rel (0) target = $region9
    $region8: #{tpu_custom_call.1} parent=1 // pred_region
      _
    $region9: #{tpu_custom_call.1} parent=1 // pred_fallthru
      _
    // Predicated region
    $region10: #{tpu_custom_call.1} parent=1 // pred_check
      _
    $region11: #{tpu_custom_call.1} parent=1 // pred_check_branch
      %19 = sbr.rel (0) target = $region13
    $region12: #{tpu_custom_call.1} parent=1 // pred_region
      _
    $region13: #{tpu_custom_call.1} parent=1 // pred_fallthru
      _
    // Predicated region
    $region14: #{tpu_custom_call.1} parent=1 // pred_check
      _
    $region15: #{tpu_custom_call.1} parent=1 // pred_check_branch
      %21 = sbr.rel (0) target = $region17
    $region16: #{tpu_custom_call.1} parent=1 // pred_region
      _
    $region17: #{tpu_custom_call.1} parent=1 // pred_fallthru
      _
    // Predicated region
    $region18: #{tpu_custom_call.1} parent=1 // pred_check
      _
    $region19: #{tpu_custom_call.1} parent=1 // pred_check_branch
      %23 = sbr.rel (0) target = $region21
    $region20: #{tpu_custom_call.1} parent=1 // pred_region
      _
    $region21: #{tpu_custom_call.1} parent=1 // pred_fallthru
      _
    // Predicated region
    $region22: #{tpu_custom_call.1} parent=1 // pred_check
      _
    $region23: #{tpu_custom_call.1} parent=1 // pred_check_branch
      %25 = sbr.rel (0) target = $region25
    $region24: #{tpu_custom_call.1} parent=1 // pred_region
      _
    $region25: #{tpu_custom_call.1} parent=1 // pred_fallthru
      _
    // Predicated region
    $region26: #{tpu_custom_call.1} parent=1 // pred_check
      _
    $region27: #{tpu_custom_call.1} parent=1 // pred_check_branch
      %27 = sbr.rel (0) target = $region29
    $region28: #{tpu_custom_call.1} parent=1 // pred_region
      _
    $region29: #{tpu_custom_call.1} parent=1 // pred_fallthru
      _
    // Predicated region
    $region30: #{tpu_custom_call.1} parent=1 // pred_check
      _
    $region31: #{tpu_custom_call.1} parent=1 // pred_check_branch
      %29 = sbr.rel (0) target = $region33
    $region32: #{tpu_custom_call.1} parent=1 // pred_region
      _
    $region33: #{tpu_custom_call.1} parent=1 // pred_fallthru
      _
    %v30 = vld [vmem:[%s0] sm:$0xff]
    %v31 = vld [vmem:[%s0 + $0x8] sm:$0xff]
    %v32 = vld [vmem:[%s1] sm:$0xff]
    %v33 = vld [vmem:[%s1 + $0x8] sm:$0xff]
    %v34 = vld [vmem:[%s1 + $0x10] sm:$0xff]
    %v35 = vld [vmem:[%s1 + $0x18] sm:$0xff]
    %v36 = vld [vmem:[%s2] sm:$0x1]
    %v38 = vlaneseq
    %v39 = vshrl.u32 %v38, 7
    %v40 = vsub.s32 0, %v39
    %v41 = vrot.slane %v36, %v40
    %vm43 = vcmask 261120
    %v45 = vsel %vm43, %v30, 0
    %v48 = vsel %vm43, %v31, 0
    %50 = vmatprep.subr.mxu0 0.0
    %51 = vmatpush1.msra.mxu0 0.0
    %52 = vmatprep.subr.mxu0 0.0
    %53 = vmatpush1.msra.mxu0 0.0
    %54 = vmatprep.subr.mxu0 0.0
    %55 = vmatpush1.msra.mxu0 0.0
    %56 = vmatprep.subr.mxu0 0.0
    %57 = vmatpush1.msra.mxu0 0.0
    %58 = vmatprep.subr.mxu0 0.0
    %59 = vmatpush1.msra.mxu0 0.0
    %60 = vmatprep.subr.mxu0 0.0
    %61 = vmatpush1.msra.mxu0 0.0
    %62 = vmatprep.subr.mxu0 0.0
    %63 = vmatpush1.msra.mxu0 0.0
    %64 = vmatprep.subr.mxu0 0.0
    %65 = vmatpush1.msra.mxu0 0.0
    %66 = vmatprep.subr.mxu0 0.0
    %67 = vmatpush1.msra.mxu0 0.0
    %68 = vmatprep.subr.mxu0 0.0
    %69 = vmatpush1.msra.mxu0 0.0
    %70 = vmatprep.subr.mxu0 0.0
    %71 = vmatpush1.msra.mxu0 0.0
    %72 = vmatprep.subr.mxu0 0.0
    %73 = vmatpush1.msra.mxu0 0.0
    %74 = vmatprep.subr.mxu0 0.0
    %75 = vmatpush1.msra.mxu0 %v35
    %76 = vmatprep.subr.mxu0 0.0
    %77 = vmatpush1.msra.mxu0 %v34
    %78 = vmatprep.subr.mxu0 0.0
    %79 = vmatpush1.msra.mxu0 %v33
    %80 = vmatprep.subr.mxu0 0.0
    %81 = vmatpush1.msra.mxu0 %v32
    %82 = vmatprep.subr.mxu0 0.0
    %83 = vmatpush2.msra.mxu0 0.0
    %84 = vmatprep.subr.mxu0 0.0
    %85 = vmatpush2.msra.mxu0 0.0
    %86 = vmatprep.subr.mxu0 0.0
    %87 = vmatpush2.msra.mxu0 0.0
    %88 = vmatprep.subr.mxu0 0.0
    %89 = vmatpush2.msra.mxu0 0.0
    %90 = vmatprep.subr.mxu0 0.0
    %91 = vmatpush2.msra.mxu0 0.0
    %92 = vmatprep.subr.mxu0 0.0
    %93 = vmatpush2.msra.mxu0 0.0
    %94 = vmatprep.subr.mxu0 0.0
    %95 = vmatpush2.msra.mxu0 0.0
    %96 = vmatprep.subr.mxu0 0.0
    %97 = vmatpush2.msra.mxu0 0.0
    %98 = vmatprep.subr.mxu0 0.0
    %99 = vmatpush2.msra.mxu0 0.0
    %100 = vmatprep.subr.mxu0 0.0
    %101 = vmatpush2.msra.mxu0 0.0
    %102 = vmatprep.subr.mxu0 0.0
    %103 = vmatpush2.msra.mxu0 0.0
    %104 = vmatprep.subr.mxu0 0.0
    %105 = vmatpush2.msra.mxu0 0.0
    %106 = vmatprep.subr.mxu0 0.0
    %107 = vmatpush2.msra.mxu0 0.0
    %108 = vmatprep.subr.mxu0 0.0
    %109 = vmatpush2.msra.mxu0 0.0
    %110 = vmatprep.subr.mxu0 0.0
    %111 = vmatpush2.msra.mxu0 0.0
    %112 = vmatprep.subr.mxu0 0.0
    %113 = vmatpush2.msra.mxu0 0.0
    %114 = vmatprep.mubr.f32.mxu0 0.0
    %115 = vmatmul.mubr.f32.gmra.mxu0 %v45
    %v116 = vpop.f32.mrf.mxu0
    %v117 = vadd.f32 %v41, %v116
    %v118 = vpop.f32.mrf.mxu0
    %119 = vmatprep.mubr.f32.mxu0 0.0
    %120 = vmatmul.mubr.f32.gmra.mxu0 %v48
    %v121 = vpop.f32.mrf.mxu0
    %v122 = vadd.f32 %v41, %v121
    %v123 = vpop.f32.mrf.mxu0
    %124 = vdwg.mxu0
    %v125 = vmul.f32 %v117, 0.5
    %v126 = vmul.f32 %v122, 0.5
    %vm127 = vcmask 64512
    %v128 = vsel %vm127, %v125, -inf
    %129 = vmax.xlane.f32.xlu0 %v128
    %v130 = vpop.xlane.xlu0 %129
    %v131 = vsel %vm127, %v126, -inf
    %132 = vmax.xlane.f32.xlu0 %v131
    %v133 = vpop.xlane.xlu0 %132
    %v134 = vsub.f32 %v130, 1.0
    %v135 = vsub.f32 %v133, 1.0
    %v136 = vsub.f32 %v130, 0.35355338
    %v137 = vsub.f32 %v133, 0.35355338
    %v138 = vsub.f32 %v125, %v134
    %v139 = vsub.f32 %v126, %v135
    %v140 = vmax.f32 %v138, 0.0
    %v141 = vmax.f32 %v139, 0.0
    %v142 = vmul.f32 %v140, %v140
    %v143 = vmul.f32 %v141, %v141
    %v144 = vsel %vm127, %v142, 0.0
    %145 = vadd.xlane.f32.xlu0 %v144
    %v146 = vpop.xlane.xlu0 %145
    %v147 = vsel %vm127, %v143, 0.0
    %148 = vadd.xlane.f32.xlu0 %v147
    %v149 = vpop.xlane.xlu0 %148
    %v150 = vsub.f32 %v146, 1.0
    %v151 = vsub.f32 %v149, 1.0
    %v152 = vsub.f32 %v136, %v134
    %v153 = vsub.f32 %v137, %v135
    %v154 = vmul.f32 %v152, 0.5
    %v155 = vmul.f32 %v153, 0.5
    %v156 = vadd.f32 %v134, %v154
    %v157 = vadd.f32 %v135, %v155
    %v158 = vsub.f32 %v125, %v156
    %v159 = vsub.f32 %v126, %v157
    %v160 = vmax.f32 %v158, 0.0
    %v161 = vmax.f32 %v159, 0.0
    %v162 = vmul.f32 %v160, %v160
    %v163 = vmul.f32 %v161, %v161
    %v164 = vsel %vm127, %v162, 0.0
    %165 = vadd.xlane.f32.xlu0 %v164
    %v166 = vpop.xlane.xlu0 %165
    %v167 = vsel %vm127, %v163, 0.0
    %168 = vadd.xlane.f32.xlu0 %v167
    %v169 = vpop.xlane.xlu0 %168
    %v170 = vsub.f32 %v166, 1.0
    %v171 = vsub.f32 %v169, 1.0
    %v172 = vmul.f32 %v170, %v150
    %v173 = vmul.f32 %v171, %v151
    %vm174 = vcmp.ge.f32.partialorder %v172, 0.0
    %vm175 = vcmp.ge.f32.partialorder %v173, 0.0
    %v176 = vsel %vm174, %v156, %v134
    %v177 = vsel %vm175, %v157, %v135
    %v178 = vmul.f32 %v154, 0.5
    %v179 = vmul.f32 %v155, 0.5
    %v180 = vadd.f32 %v176, %v178
    %v181 = vadd.f32 %v177, %v179
    %v182 = vsub.f32 %v125, %v180
    %v183 = vsub.f32 %v126, %v181
    %v184 = vmax.f32 %v182, 0.0
    %v185 = vmax.f32 %v183, 0.0
    %v186 = vmul.f32 %v184, %v184
    %v187 = vmul.f32 %v185, %v185
    %v188 = vsel %vm127, %v186, 0.0
    %189 = vadd.xlane.f32.xlu0 %v188
    %v190 = vpop.xlane.xlu0 %189
    %v191 = vsel %vm127, %v187, 0.0
    %192 = vadd.xlane.f32.xlu0 %v191
    %v193 = vpop.xlane.xlu0 %192
    %v194 = vsub.f32 %v190, 1.0
    %v195 = vsub.f32 %v193, 1.0
    %v196 = vmul.f32 %v194, %v150
    %v197 = vmul.f32 %v195, %v151
    %vm198 = vcmp.ge.f32.partialorder %v196, 0.0
    %vm199 = vcmp.ge.f32.partialorder %v197, 0.0
    %v200 = vsel %vm198, %v180, %v176
    %v201 = vsel %vm199, %v181, %v177
    %v202 = vmul.f32 %v178, 0.5
    %v203 = vmul.f32 %v179, 0.5
    %v204 = vadd.f32 %v200, %v202
    %v205 = vadd.f32 %v201, %v203
    %v206 = vsub.f32 %v125, %v204
    %v207 = vsub.f32 %v126, %v205
    %v208 = vmax.f32 %v206, 0.0
    %v209 = vmax.f32 %v207, 0.0
    %v210 = vmul.f32 %v208, %v208
    %v211 = vmul.f32 %v209, %v209
    %v212 = vsel %vm127, %v210, 0.0
    %213 = vadd.xlane.f32.xlu0 %v212
    %v214 = vpop.xlane.xlu0 %213
    %v215 = vsel %vm127, %v211, 0.0
    %216 = vadd.xlane.f32.xlu0 %v215
    %v217 = vpop.xlane.xlu0 %216
    %v218 = vsub.f32 %v214, 1.0
    %v219 = vsub.f32 %v217, 1.0
    %v220 = vmul.f32 %v218, %v150
    %v221 = vmul.f32 %v219, %v151
    %vm222 = vcmp.ge.f32.partialorder %v220, 0.0
    %vm223 = vcmp.ge.f32.partialorder %v221, 0.0
    %v224 = vsel %vm222, %v204, %v200
    %v225 = vsel %vm223, %v205, %v201
    %v226 = vmul.f32 %v202, 0.5
    %v227 = vmul.f32 %v203, 0.5
    %v228 = vadd.f32 %v224, %v226
    %v229 = vadd.f32 %v225, %v227
    %v230 = vsub.f32 %v125, %v228
    %v231 = vsub.f32 %v126, %v229
    %v232 = vmax.f32 %v230, 0.0
    %v233 = vmax.f32 %v231, 0.0
    %v234 = vmul.f32 %v232, %v232
    %v235 = vmul.f32 %v233, %v233
    %v236 = vsel %vm127, %v234, 0.0
    %237 = vadd.xlane.f32.xlu0 %v236
    %v238 = vpop.xlane.xlu0 %237
    %v239 = vsel %vm127, %v235, 0.0
    %240 = vadd.xlane.f32.xlu0 %v239
    %v241 = vpop.xlane.xlu0 %240
    %v242 = vsub.f32 %v238, 1.0
    %v243 = vsub.f32 %v241, 1.0
    %v244 = vmul.f32 %v242, %v150
    %v245 = vmul.f32 %v243, %v151
    %vm246 = vcmp.ge.f32.partialorder %v244, 0.0
    %vm247 = vcmp.ge.f32.partialorder %v245, 0.0
    %v248 = vsel %vm246, %v228, %v224
    %v249 = vsel %vm247, %v229, %v225
    %v250 = vmul.f32 %v226, 0.5
    %v251 = vmul.f32 %v227, 0.5
    %v252 = vadd.f32 %v248, %v250
    %v253 = vadd.f32 %v249, %v251
    %v254 = vsub.f32 %v125, %v252
    %v255 = vsub.f32 %v126, %v253
    %v256 = vmax.f32 %v254, 0.0
    %v257 = vmax.f32 %v255, 0.0
    %v258 = vmul.f32 %v256, %v256
    %v259 = vmul.f32 %v257, %v257
    %v260 = vsel %vm127, %v258, 0.0
    %261 = vadd.xlane.f32.xlu0 %v260
    %v262 = vpop.xlane.xlu0 %261
    %v263 = vsel %vm127, %v259, 0.0
    %264 = vadd.xlane.f32.xlu0 %v263
    %v265 = vpop.xlane.xlu0 %264
    %v266 = vsub.f32 %v262, 1.0
    %v267 = vsub.f32 %v265, 1.0
    %v268 = vmul.f32 %v266, %v150
    %v269 = vmul.f32 %v267, %v151
    %vm270 = vcmp.ge.f32.partialorder %v268, 0.0
    %vm271 = vcmp.ge.f32.partialorder %v269, 0.0
    %v272 = vsel %vm270, %v252, %v248
    %v273 = vsel %vm271, %v253, %v249
    %v274 = vmul.f32 %v250, 0.5
    %v275 = vmul.f32 %v251, 0.5
    %v276 = vadd.f32 %v272, %v274
    %v277 = vadd.f32 %v273, %v275
    %v278 = vsub.f32 %v125, %v276
    %v279 = vsub.f32 %v126, %v277
    %v280 = vmax.f32 %v278, 0.0
    %v281 = vmax.f32 %v279, 0.0
    %v282 = vmul.f32 %v280, %v280
    %v283 = vmul.f32 %v281, %v281
    %v284 = vsel %vm127, %v282, 0.0
    %285 = vadd.xlane.f32.xlu0 %v284
    %v286 = vpop.xlane.xlu0 %285
    %v287 = vsel %vm127, %v283, 0.0
    %288 = vadd.xlane.f32.xlu0 %v287
    %v289 = vpop.xlane.xlu0 %288
    %v290 = vsub.f32 %v286, 1.0
    %v291 = vsub.f32 %v289, 1.0
    %v292 = vmul.f32 %v290, %v150
    %v293 = vmul.f32 %v291, %v151
    %vm294 = vcmp.ge.f32.partialorder %v292, 0.0
    %vm295 = vcmp.ge.f32.partialorder %v293, 0.0
    %v296 = vsel %vm294, %v276, %v272
    %v297 = vsel %vm295, %v277, %v273
    %v298 = vmul.f32 %v274, 0.5
    %v299 = vmul.f32 %v275, 0.5
    %v300 = vadd.f32 %v296, %v298
    %v301 = vadd.f32 %v297, %v299
    %v302 = vsub.f32 %v125, %v300
    %v303 = vsub.f32 %v126, %v301
    %v304 = vmax.f32 %v302, 0.0
    %v305 = vmax.f32 %v303, 0.0
    %v306 = vmul.f32 %v304, %v304
    %v307 = vmul.f32 %v305, %v305
    %v308 = vsel %vm127, %v306, 0.0
    %309 = vadd.xlane.f32.xlu0 %v308
    %v310 = vpop.xlane.xlu0 %309
    %v311 = vsel %vm127, %v307, 0.0
    %312 = vadd.xlane.f32.xlu0 %v311
    %v313 = vpop.xlane.xlu0 %312
    %v314 = vsub.f32 %v310, 1.0
    %v315 = vsub.f32 %v313, 1.0
    %v316 = vmul.f32 %v314, %v150
    %v317 = vmul.f32 %v315, %v151
    %vm318 = vcmp.ge.f32.partialorder %v316, 0.0
    %vm319 = vcmp.ge.f32.partialorder %v317, 0.0
    %v320 = vsel %vm318, %v300, %v296
    %v321 = vsel %vm319, %v301, %v297
    %v322 = vmul.f32 %v298, 0.5
    %v323 = vmul.f32 %v299, 0.5
    %v324 = vadd.f32 %v320, %v322
    %v325 = vadd.f32 %v321, %v323
    %v326 = vsub.f32 %v125, %v324
    %v327 = vsub.f32 %v126, %v325
    %v328 = vmax.f32 %v326, 0.0
    %v329 = vmax.f32 %v327, 0.0
    %v330 = vmul.f32 %v328, %v328
    %v331 = vmul.f32 %v329, %v329
    %v332 = vsel %vm127, %v330, 0.0
    %333 = vadd.xlane.f32.xlu0 %v332
    %v334 = vpop.xlane.xlu0 %333
    %v335 = vsel %vm127, %v331, 0.0
    %336 = vadd.xlane.f32.xlu0 %v335
    %v337 = vpop.xlane.xlu0 %336
    %v338 = vsub.f32 %v334, 1.0
    %v339 = vsub.f32 %v337, 1.0
    %v340 = vmul.f32 %v338, %v150
    %v341 = vmul.f32 %v339, %v151
    %vm342 = vcmp.ge.f32.partialorder %v340, 0.0
    %vm343 = vcmp.ge.f32.partialorder %v341, 0.0
    %v344 = vsel %vm342, %v324, %v320
    %v345 = vsel %vm343, %v325, %v321
    %v346 = vmul.f32 %v322, 0.5
    %v347 = vmul.f32 %v323, 0.5
    %v348 = vadd.f32 %v344, %v346
    %v349 = vadd.f32 %v345, %v347
    %v350 = vsub.f32 %v125, %v348
    %v351 = vsub.f32 %v126, %v349
    %v352 = vmax.f32 %v350, 0.0
    %v353 = vmax.f32 %v351, 0.0
    %v354 = vmul.f32 %v352, %v352
    %v355 = vmul.f32 %v353, %v353
    %v356 = vsel %vm127, %v354, 0.0
    %357 = vadd.xlane.f32.xlu0 %v356
    %v358 = vpop.xlane.xlu0 %357
    %v359 = vsel %vm127, %v355, 0.0
    %360 = vadd.xlane.f32.xlu0 %v359
    %v361 = vpop.xlane.xlu0 %360
    %v362 = vsub.f32 %v358, 1.0
    %v363 = vsub.f32 %v361, 1.0
    %v364 = vmul.f32 %v362, %v150
    %v365 = vmul.f32 %v363, %v151
    %vm366 = vcmp.ge.f32.partialorder %v364, 0.0
    %vm367 = vcmp.ge.f32.partialorder %v365, 0.0
    %v368 = vsel %vm366, %v348, %v344
    %v369 = vsel %vm367, %v349, %v345
    %v370 = vmul.f32 %v346, 0.5
    %v371 = vmul.f32 %v347, 0.5
    %v372 = vadd.f32 %v368, %v370
    %v373 = vadd.f32 %v369, %v371
    %v374 = vsub.f32 %v125, %v372
    %v375 = vsub.f32 %v126, %v373
    %v376 = vmax.f32 %v374, 0.0
    %v377 = vmax.f32 %v375, 0.0
    %v378 = vmul.f32 %v376, %v376
    %v379 = vmul.f32 %v377, %v377
    %v380 = vsel %vm127, %v378, 0.0
    %381 = vadd.xlane.f32.xlu0 %v380
    %v382 = vpop.xlane.xlu0 %381
    %v383 = vsel %vm127, %v379, 0.0
    %384 = vadd.xlane.f32.xlu0 %v383
    %v385 = vpop.xlane.xlu0 %384
    %v386 = vsub.f32 %v382, 1.0
    %v387 = vsub.f32 %v385, 1.0
    %v388 = vmul.f32 %v386, %v150
    %v389 = vmul.f32 %v387, %v151
    %vm390 = vcmp.ge.f32.partialorder %v388, 0.0
    %vm391 = vcmp.ge.f32.partialorder %v389, 0.0
    %v392 = vsel %vm390, %v372, %v368
    %v393 = vsel %vm391, %v373, %v369
    %v394 = vmul.f32 %v370, 0.5
    %v395 = vmul.f32 %v371, 0.5
    %v396 = vadd.f32 %v392, %v394
    %v397 = vadd.f32 %v393, %v395
    %v398 = vsub.f32 %v125, %v396
    %v399 = vsub.f32 %v126, %v397
    %v400 = vmax.f32 %v398, 0.0
    %v401 = vmax.f32 %v399, 0.0
    %v402 = vmul.f32 %v400, %v400
    %v403 = vmul.f32 %v401, %v401
    %v404 = vsel %vm127, %v402, 0.0
    %405 = vadd.xlane.f32.xlu0 %v404
    %v406 = vpop.xlane.xlu0 %405
    %v407 = vsel %vm127, %v403, 0.0
    %408 = vadd.xlane.f32.xlu0 %v407
    %v409 = vpop.xlane.xlu0 %408
    %v410 = vsub.f32 %v406, 1.0
    %v411 = vsub.f32 %v409, 1.0
    %v412 = vmul.f32 %v410, %v150
    %v413 = vmul.f32 %v411, %v151
    %vm414 = vcmp.ge.f32.partialorder %v412, 0.0
    %vm415 = vcmp.ge.f32.partialorder %v413, 0.0
    %v416 = vsel %vm414, %v396, %v392
    %v417 = vsel %vm415, %v397, %v393
    %v418 = vmul.f32 %v394, 0.5
    %v419 = vmul.f32 %v395, 0.5
    %v420 = vadd.f32 %v416, %v418
    %v421 = vadd.f32 %v417, %v419
    %v422 = vsub.f32 %v125, %v420
    %v423 = vsub.f32 %v126, %v421
    %v424 = vmax.f32 %v422, 0.0
    %v425 = vmax.f32 %v423, 0.0
    %v426 = vmul.f32 %v424, %v424
    %v427 = vmul.f32 %v425, %v425
    %v428 = vsel %vm127, %v426, 0.0
    %429 = vadd.xlane.f32.xlu0 %v428
    %v430 = vpop.xlane.xlu0 %429
    %v431 = vsel %vm127, %v427, 0.0
    %432 = vadd.xlane.f32.xlu0 %v431
    %v433 = vpop.xlane.xlu0 %432
    %v434 = vsub.f32 %v430, 1.0
    %v435 = vsub.f32 %v433, 1.0
    %v436 = vmul.f32 %v434, %v150
    %v437 = vmul.f32 %v435, %v151
    %vm438 = vcmp.ge.f32.partialorder %v436, 0.0
    %vm439 = vcmp.ge.f32.partialorder %v437, 0.0
    %v440 = vsel %vm438, %v420, %v416
    %v441 = vsel %vm439, %v421, %v417
    %v442 = vmul.f32 %v418, 0.5
    %v443 = vmul.f32 %v419, 0.5
    %v444 = vadd.f32 %v440, %v442
    %v445 = vadd.f32 %v441, %v443
    %v446 = vsub.f32 %v125, %v444
    %v447 = vsub.f32 %v126, %v445
    %v448 = vmax.f32 %v446, 0.0
    %v449 = vmax.f32 %v447, 0.0
    %v450 = vmul.f32 %v448, %v448
    %v451 = vmul.f32 %v449, %v449
    %v452 = vsel %vm127, %v450, 0.0
    %453 = vadd.xlane.f32.xlu0 %v452
    %v454 = vpop.xlane.xlu0 %453
    %v455 = vsel %vm127, %v451, 0.0
    %456 = vadd.xlane.f32.xlu0 %v455
    %v457 = vpop.xlane.xlu0 %456
    %v458 = vsub.f32 %v454, 1.0
    %v459 = vsub.f32 %v457, 1.0
    %v460 = vmul.f32 %v458, %v150
    %v461 = vmul.f32 %v459, %v151
    %vm462 = vcmp.ge.f32.partialorder %v460, 0.0
    %vm463 = vcmp.ge.f32.partialorder %v461, 0.0
    %v464 = vsel %vm462, %v444, %v440
    %v465 = vsel %vm463, %v445, %v441
    %v466 = vmul.f32 %v442, 0.5
    %v467 = vmul.f32 %v443, 0.5
    %v468 = vadd.f32 %v464, %v466
    %v469 = vadd.f32 %v465, %v467
    %v470 = vsub.f32 %v125, %v468
    %v471 = vsub.f32 %v126, %v469
    %v472 = vmax.f32 %v470, 0.0
    %v473 = vmax.f32 %v471, 0.0
    %v474 = vmul.f32 %v472, %v472
    %v475 = vmul.f32 %v473, %v473
    %v476 = vsel %vm127, %v474, 0.0
    %477 = vadd.xlane.f32.xlu0 %v476
    %v478 = vpop.xlane.xlu0 %477
    %v479 = vsel %vm127, %v475, 0.0
    %480 = vadd.xlane.f32.xlu0 %v479
    %v481 = vpop.xlane.xlu0 %480
    %v482 = vsub.f32 %v478, 1.0
    %v483 = vsub.f32 %v481, 1.0
    %v484 = vmul.f32 %v482, %v150
    %v485 = vmul.f32 %v483, %v151
    %vm486 = vcmp.ge.f32.partialorder %v484, 0.0
    %vm487 = vcmp.ge.f32.partialorder %v485, 0.0
    %v488 = vsel %vm486, %v468, %v464
    %v489 = vsel %vm487, %v469, %v465
    %v490 = vmul.f32 %v466, 0.5
    %v491 = vmul.f32 %v467, 0.5
    %v492 = vadd.f32 %v488, %v490
    %v493 = vadd.f32 %v489, %v491
    %v494 = vsub.f32 %v125, %v492
    %v495 = vsub.f32 %v126, %v493
    %v496 = vmax.f32 %v494, 0.0
    %v497 = vmax.f32 %v495, 0.0
    %v498 = vmul.f32 %v496, %v496
    %v499 = vmul.f32 %v497, %v497
    %v500 = vsel %vm127, %v498, 0.0
    %501 = vadd.xlane.f32.xlu0 %v500
    %v502 = vpop.xlane.xlu0 %501
    %v503 = vsel %vm127, %v499, 0.0
    %504 = vadd.xlane.f32.xlu0 %v503
    %v505 = vpop.xlane.xlu0 %504
    %v506 = vsub.f32 %v502, 1.0
    %v507 = vsub.f32 %v505, 1.0
    %v508 = vmul.f32 %v506, %v150
    %v509 = vmul.f32 %v507, %v151
    %vm510 = vcmp.ge.f32.partialorder %v508, 0.0
    %vm511 = vcmp.ge.f32.partialorder %v509, 0.0
    %v512 = vsel %vm510, %v492, %v488
    %v513 = vsel %vm511, %v493, %v489
    %v514 = vmul.f32 %v490, 0.5
    %v515 = vmul.f32 %v491, 0.5
    %v516 = vadd.f32 %v512, %v514
    %v517 = vadd.f32 %v513, %v515
    %v518 = vsub.f32 %v125, %v516
    %v519 = vsub.f32 %v126, %v517
    %v520 = vmax.f32 %v518, 0.0
    %v521 = vmax.f32 %v519, 0.0
    %v522 = vmul.f32 %v520, %v520
    %v523 = vmul.f32 %v521, %v521
    %v524 = vsel %vm127, %v522, 0.0
    %525 = vadd.xlane.f32.xlu0 %v524
    %v526 = vpop.xlane.xlu0 %525
    %v527 = vsel %vm127, %v523, 0.0
    %528 = vadd.xlane.f32.xlu0 %v527
    %v529 = vpop.xlane.xlu0 %528
    %v530 = vsub.f32 %v526, 1.0
    %v531 = vsub.f32 %v529, 1.0
    %v532 = vmul.f32 %v530, %v150
    %v533 = vmul.f32 %v531, %v151
    %vm534 = vcmp.ge.f32.partialorder %v532, 0.0
    %vm535 = vcmp.ge.f32.partialorder %v533, 0.0
    %v536 = vsel %vm534, %v516, %v512
    %v537 = vsel %vm535, %v517, %v513
    %v538 = vmul.f32 %v514, 0.5
    %v539 = vmul.f32 %v515, 0.5
    %v540 = vadd.f32 %v536, %v538
    %v541 = vadd.f32 %v537, %v539
    %v542 = vsub.f32 %v125, %v540
    %v543 = vsub.f32 %v126, %v541
    %v544 = vmax.f32 %v542, 0.0
    %v545 = vmax.f32 %v543, 0.0
    %v546 = vmul.f32 %v544, %v544
    %v547 = vmul.f32 %v545, %v545
    %v548 = vsel %vm127, %v546, 0.0
    %549 = vadd.xlane.f32.xlu0 %v548
    %v550 = vpop.xlane.xlu0 %549
    %v551 = vsel %vm127, %v547, 0.0
    %552 = vadd.xlane.f32.xlu0 %v551
    %v553 = vpop.xlane.xlu0 %552
    %v554 = vsub.f32 %v550, 1.0
    %v555 = vsub.f32 %v553, 1.0
    %v556 = vmul.f32 %v554, %v150
    %v557 = vmul.f32 %v555, %v151
    %vm558 = vcmp.ge.f32.partialorder %v556, 0.0
    %vm559 = vcmp.ge.f32.partialorder %v557, 0.0
    %v560 = vsel %vm558, %v540, %v536
    %v561 = vsel %vm559, %v541, %v537
    %v562 = vmul.f32 %v538, 0.5
    %v563 = vmul.f32 %v539, 0.5
    %v564 = vadd.f32 %v560, %v562
    %v565 = vadd.f32 %v561, %v563
    %v566 = vsub.f32 %v125, %v564
    %v567 = vsub.f32 %v126, %v565
    %v568 = vmax.f32 %v566, 0.0
    %v569 = vmax.f32 %v567, 0.0
    %v570 = vmul.f32 %v568, %v568
    %v571 = vmul.f32 %v569, %v569
    %v572 = vsel %vm127, %v570, 0.0
    %573 = vadd.xlane.f32.xlu0 %v572
    %v574 = vpop.xlane.xlu0 %573
    %v575 = vsel %vm127, %v571, 0.0
    %576 = vadd.xlane.f32.xlu0 %v575
    %v577 = vpop.xlane.xlu0 %576
    %v578 = vsub.f32 %v574, 1.0
    %v579 = vsub.f32 %v577, 1.0
    %v580 = vmul.f32 %v578, %v150
    %v581 = vmul.f32 %v579, %v151
    %vm582 = vcmp.ge.f32.partialorder %v580, 0.0
    %vm583 = vcmp.ge.f32.partialorder %v581, 0.0
    %v584 = vsel %vm582, %v564, %v560
    %v585 = vsel %vm583, %v565, %v561
    %v586 = vmul.f32 %v562, 0.5
    %v587 = vmul.f32 %v563, 0.5
    %v588 = vadd.f32 %v584, %v586
    %v589 = vadd.f32 %v585, %v587
    %v590 = vsub.f32 %v125, %v588
    %v591 = vsub.f32 %v126, %v589
    %v592 = vmax.f32 %v590, 0.0
    %v593 = vmax.f32 %v591, 0.0
    %v594 = vmul.f32 %v592, %v592
    %v595 = vmul.f32 %v593, %v593
    %v596 = vsel %vm127, %v594, 0.0
    %597 = vadd.xlane.f32.xlu0 %v596
    %v598 = vpop.xlane.xlu0 %597
    %v599 = vsel %vm127, %v595, 0.0
    %600 = vadd.xlane.f32.xlu0 %v599
    %v601 = vpop.xlane.xlu0 %600
    %v602 = vsub.f32 %v598, 1.0
    %v603 = vsub.f32 %v601, 1.0
    %v604 = vmul.f32 %v602, %v150
    %v605 = vmul.f32 %v603, %v151
    %vm606 = vcmp.ge.f32.partialorder %v604, 0.0
    %vm607 = vcmp.ge.f32.partialorder %v605, 0.0
    %v608 = vsel %vm606, %v588, %v584
    %v609 = vsel %vm607, %v589, %v585
    %v610 = vmul.f32 %v586, 0.5
    %v611 = vmul.f32 %v587, 0.5
    %v612 = vadd.f32 %v608, %v610
    %v613 = vadd.f32 %v609, %v611
    %v614 = vsub.f32 %v125, %v612
    %v615 = vsub.f32 %v126, %v613
    %v616 = vmax.f32 %v614, 0.0
    %v617 = vmax.f32 %v615, 0.0
    %v618 = vmul.f32 %v616, %v616
    %v619 = vmul.f32 %v617, %v617
    %v620 = vsel %vm127, %v618, 0.0
    %621 = vadd.xlane.f32.xlu0 %v620
    %v622 = vpop.xlane.xlu0 %621
    %v623 = vsel %vm127, %v619, 0.0
    %624 = vadd.xlane.f32.xlu0 %v623
    %v625 = vpop.xlane.xlu0 %624
    %v626 = vsub.f32 %v622, 1.0
    %v627 = vsub.f32 %v625, 1.0
    %v628 = vmul.f32 %v626, %v150
    %v629 = vmul.f32 %v627, %v151
    %vm630 = vcmp.ge.f32.partialorder %v628, 0.0
    %vm631 = vcmp.ge.f32.partialorder %v629, 0.0
    %v632 = vsel %vm630, %v612, %v608
    %v633 = vsel %vm631, %v613, %v609
    %v634 = vmul.f32 %v610, 0.5
    %v635 = vmul.f32 %v611, 0.5
    %v636 = vadd.f32 %v632, %v634
    %v637 = vadd.f32 %v633, %v635
    %v638 = vsub.f32 %v125, %v636
    %v639 = vsub.f32 %v126, %v637
    %v640 = vmax.f32 %v638, 0.0
    %v641 = vmax.f32 %v639, 0.0
    %v642 = vmul.f32 %v640, %v640
    %v643 = vmul.f32 %v641, %v641
    %v644 = vsel %vm127, %v642, 0.0
    %645 = vadd.xlane.f32.xlu0 %v644
    %v646 = vpop.xlane.xlu0 %645
    %v647 = vsel %vm127, %v643, 0.0
    %648 = vadd.xlane.f32.xlu0 %v647
    %v649 = vpop.xlane.xlu0 %648
    %v650 = vsub.f32 %v646, 1.0
    %v651 = vsub.f32 %v649, 1.0
    %v652 = vmul.f32 %v650, %v150
    %v653 = vmul.f32 %v651, %v151
    %vm654 = vcmp.ge.f32.partialorder %v652, 0.0
    %vm655 = vcmp.ge.f32.partialorder %v653, 0.0
    %v656 = vsel %vm654, %v636, %v632
    %v657 = vsel %vm655, %v637, %v633
    %v658 = vmul.f32 %v634, 0.5
    %v659 = vmul.f32 %v635, 0.5
    %v660 = vadd.f32 %v656, %v658
    %v661 = vadd.f32 %v657, %v659
    %v662 = vsub.f32 %v125, %v660
    %v663 = vsub.f32 %v126, %v661
    %v664 = vmax.f32 %v662, 0.0
    %v665 = vmax.f32 %v663, 0.0
    %v666 = vmul.f32 %v664, %v664
    %v667 = vmul.f32 %v665, %v665
    %v668 = vsel %vm127, %v666, 0.0
    %669 = vadd.xlane.f32.xlu0 %v668
    %v670 = vpop.xlane.xlu0 %669
    %v671 = vsel %vm127, %v667, 0.0
    %672 = vadd.xlane.f32.xlu0 %v671
    %v673 = vpop.xlane.xlu0 %672
    %v674 = vsub.f32 %v670, 1.0
    %v675 = vsub.f32 %v673, 1.0
    %v676 = vmul.f32 %v674, %v150
    %v677 = vmul.f32 %v675, %v151
    %vm678 = vcmp.ge.f32.partialorder %v676, 0.0
    %vm679 = vcmp.ge.f32.partialorder %v677, 0.0
    %v680 = vsel %vm678, %v660, %v656
    %v681 = vsel %vm679, %v661, %v657
    %v682 = vmul.f32 %v658, 0.5
    %v683 = vmul.f32 %v659, 0.5
    %v684 = vadd.f32 %v680, %v682
    %v685 = vadd.f32 %v681, %v683
    %v686 = vsub.f32 %v125, %v684
    %v687 = vsub.f32 %v126, %v685
    %v688 = vmax.f32 %v686, 0.0
    %v689 = vmax.f32 %v687, 0.0
    %v690 = vmul.f32 %v688, %v688
    %v691 = vmul.f32 %v689, %v689
    %v692 = vsel %vm127, %v690, 0.0
    %693 = vadd.xlane.f32.xlu0 %v692
    %v694 = vpop.xlane.xlu0 %693
    %v695 = vsel %vm127, %v691, 0.0
    %696 = vadd.xlane.f32.xlu0 %v695
    %v697 = vpop.xlane.xlu0 %696
    %v698 = vsub.f32 %v694, 1.0
    %v699 = vsub.f32 %v697, 1.0
    %v700 = vmul.f32 %v698, %v150
    %v701 = vmul.f32 %v699, %v151
    %vm702 = vcmp.ge.f32.partialorder %v700, 0.0
    %vm703 = vcmp.ge.f32.partialorder %v701, 0.0
    %v704 = vsel %vm702, %v684, %v680
    %v705 = vsel %vm703, %v685, %v681
    %v706 = vmul.f32 %v682, 0.5
    %v707 = vmul.f32 %v683, 0.5
    %v708 = vadd.f32 %v704, %v706
    %v709 = vadd.f32 %v705, %v707
    %v710 = vsub.f32 %v125, %v708
    %v711 = vsub.f32 %v126, %v709
    %v712 = vmax.f32 %v710, 0.0
    %v713 = vmax.f32 %v711, 0.0
    %v714 = vmul.f32 %v712, %v712
    %v715 = vmul.f32 %v713, %v713
    %v716 = vsel %vm127, %v714, 0.0
    %717 = vadd.xlane.f32.xlu0 %v716
    %v718 = vpop.xlane.xlu0 %717
    %v719 = vsel %vm127, %v715, 0.0
    %720 = vadd.xlane.f32.xlu0 %v719
    %v721 = vpop.xlane.xlu0 %720
    %v722 = vsub.f32 %v718, 1.0
    %v723 = vsub.f32 %v721, 1.0
    %v724 = vmul.f32 %v722, %v150
    %v725 = vmul.f32 %v723, %v151
    %vm726 = vcmp.ge.f32.partialorder %v724, 0.0
    %vm727 = vcmp.ge.f32.partialorder %v725, 0.0
    %v728 = vsel %vm726, %v708, %v704
    %v729 = vsel %vm727, %v709, %v705
    %v730 = vmul.f32 %v706, 0.5
    %v731 = vmul.f32 %v707, 0.5
    %v732 = vadd.f32 %v728, %v730
    %v733 = vadd.f32 %v729, %v731
    %v734 = vsub.f32 %v125, %v732
    %v735 = vsub.f32 %v126, %v733
    %v736 = vmax.f32 %v734, 0.0
    %v737 = vmax.f32 %v735, 0.0
    %v738 = vmul.f32 %v736, %v736
    %v739 = vmul.f32 %v737, %v737
    %v740 = vsel %vm127, %v738, 0.0
    %741 = vadd.xlane.f32.xlu0 %v740
    %v742 = vpop.xlane.xlu0 %741
    %v743 = vsel %vm127, %v739, 0.0
    %744 = vadd.xlane.f32.xlu0 %v743
    %v745 = vpop.xlane.xlu0 %744
    %v746 = vrcp.pop %v742
    %v747 = vrcp.pop %v745
    %v748 = vmul.f32 %v738, %v746
    %v749 = vmul.f32 %v739, %v747
    %vm750 = vcmp.gt.f32.partialorder %v748, 1e-09
    %vm751 = vcmp.gt.f32.partialorder %v749, 1e-09
    %v752 = vsel %vm750, %v748, 0.0
    %v753 = vsel %vm751, %v749, 0.0
    %v754 = vld [vmem:[%s3] sm:$0xff]
    %v755 = vld [vmem:[%s3 + $0x8] sm:$0xff]
    %v756 = vld [vmem:[%s3 + $0x10] sm:$0xff]
    %v757 = vld [vmem:[%s3 + $0x18] sm:$0xff]
    %v758 = vld [vmem:[%s3 + $0x20] sm:$0xff]
    %v759 = vld [vmem:[%s3 + $0x28] sm:$0xff]
    %v760 = vld [vmem:[%s3 + $0x30] sm:$0xff]
    %v761 = vld [vmem:[%s3 + $0x38] sm:$0xff]
    %v762 = vld [vmem:[%s3 + $0x40] sm:$0xff]
    %v763 = vld [vmem:[%s3 + $0x48] sm:$0xff]
    %v764 = vld [vmem:[%s3 + $0x50] sm:$0xff]
    %v765 = vld [vmem:[%s3 + $0x58] sm:$0xff]
    %v766 = vld [vmem:[%s3 + $0x60] sm:$0xff]
    %v767 = vld [vmem:[%s3 + $0x68] sm:$0xff]
    %v768 = vld [vmem:[%s3 + $0x70] sm:$0xff]
    %v769 = vld [vmem:[%s3 + $0x78] sm:$0xff]
    %v770 = vld [vmem:[%s3 + $0x80] sm:$0xff]
    %v771 = vld [vmem:[%s3 + $0x88] sm:$0xff]
    %v772 = vld [vmem:[%s3 + $0x90] sm:$0xff]
    %v773 = vld [vmem:[%s3 + $0x98] sm:$0xff]
    %v774 = vld [vmem:[%s3 + $0xa0] sm:$0xff]
    %v775 = vld [vmem:[%s3 + $0xa8] sm:$0xff]
    %v776 = vld [vmem:[%s3 + $0xb0] sm:$0xff]
    %v777 = vld [vmem:[%s3 + $0xb8] sm:$0xff]
    %v778 = vld [vmem:[%s3 + $0xc0] sm:$0xff]
    %v779 = vld [vmem:[%s3 + $0xc8] sm:$0xff]
    %v780 = vld [vmem:[%s3 + $0xd0] sm:$0xff]
    %v781 = vld [vmem:[%s3 + $0xd8] sm:$0xff]
    %v782 = vld [vmem:[%s3 + $0xe0] sm:$0xff]
    %v783 = vld [vmem:[%s3 + $0xe8] sm:$0xff]
    %v784 = vld [vmem:[%s3 + $0xf0] sm:$0xff]
    %v785 = vld [vmem:[%s3 + $0xf8] sm:$0xff]
    %v786 = vld [vmem:[%s4] sm:$0xff]
    %v788 = vlaneseq
    %v789 = vshrl.u32 %v788, 7
    %v790 = vsub.s32 0, %v789
    %v791 = vrot.slane %v786, %v790
    %v792 = vlaneseq
    %v793 = vshrl.u32 %v792, 7
    %v794 = vsub.s32 1, %v793
    %v795 = vrot.slane %v786, %v794
    %v796 = vlaneseq
    %v797 = vshrl.u32 %v796, 7
    %v798 = vsub.s32 2, %v797
    %v799 = vrot.slane %v786, %v798
    %v800 = vlaneseq
    %v801 = vshrl.u32 %v800, 7
    %v802 = vsub.s32 3, %v801
    %v803 = vrot.slane %v786, %v802
    %v804 = vlaneseq
    %v805 = vshrl.u32 %v804, 7
    %v806 = vsub.s32 4, %v805
    %v807 = vrot.slane %v786, %v806
    %v808 = vlaneseq
    %v809 = vshrl.u32 %v808, 7
    %v810 = vsub.s32 5, %v809
    %v811 = vrot.slane %v786, %v810
    %v812 = vlaneseq
    %v813 = vshrl.u32 %v812, 7
    %v814 = vsub.s32 6, %v813
    %v815 = vrot.slane %v786, %v814
    %v816 = vlaneseq
    %v817 = vshrl.u32 %v816, 7
    %v818 = vsub.s32 7, %v817
    %v819 = vrot.slane %v786, %v818
    %828 = vmatprep.subr.mxu0 0.0
    %829 = vmatpush1.msra.mxu0 0.0
    %830 = vmatprep.subr.mxu0 0.0
    %831 = vmatpush1.msra.mxu0 0.0
    %832 = vmatprep.subr.mxu0 0.0
    %833 = vmatpush1.msra.mxu0 0.0
    %834 = vmatprep.subr.mxu0 0.0
    %835 = vmatpush1.msra.mxu0 0.0
    %836 = vmatprep.subr.mxu0 0.0
    %837 = vmatpush1.msra.mxu0 0.0
    %838 = vmatprep.subr.mxu0 0.0
    %839 = vmatpush1.msra.mxu0 0.0
    %840 = vmatprep.subr.mxu0 0.0
    %841 = vmatpush1.msra.mxu0 0.0
    %842 = vmatprep.subr.mxu0 0.0
    %843 = vmatpush1.msra.mxu0 0.0
    %844 = vmatprep.subr.mxu0 0.0
    %845 = vmatpush1.msra.mxu0 0.0
    %846 = vmatprep.subr.mxu0 0.0
    %847 = vmatpush1.msra.mxu0 0.0
    %848 = vmatprep.subr.mxu0 0.0
    %849 = vmatpush1.msra.mxu0 0.0
    %850 = vmatprep.subr.mxu0 0.0
    %851 = vmatpush1.msra.mxu0 0.0
    %852 = vmatprep.subr.mxu0 %v779
    %853 = vmatpush1.msra.mxu0 %v778
    %854 = vmatprep.subr.mxu0 %v771
    %855 = vmatpush1.msra.mxu0 %v770
    %856 = vmatprep.subr.mxu0 %v763
    %857 = vmatpush1.msra.mxu0 %v762
    %858 = vmatprep.subr.mxu0 %v755
    %859 = vmatpush1.msra.mxu0 %v754
    %860 = vmatprep.subr.mxu0 0.0
    %861 = vmatpush2.msra.mxu0 0.0
    %862 = vmatprep.subr.mxu0 0.0
    %863 = vmatpush2.msra.mxu0 0.0
    %864 = vmatprep.subr.mxu0 0.0
    %865 = vmatpush2.msra.mxu0 0.0
    %866 = vmatprep.subr.mxu0 0.0
    %867 = vmatpush2.msra.mxu0 0.0
    %868 = vmatprep.subr.mxu0 0.0
    %869 = vmatpush2.msra.mxu0 0.0
    %870 = vmatprep.subr.mxu0 0.0
    %871 = vmatpush2.msra.mxu0 0.0
    %872 = vmatprep.subr.mxu0 0.0
    %873 = vmatpush2.msra.mxu0 0.0
    %874 = vmatprep.subr.mxu0 0.0
    %875 = vmatpush2.msra.mxu0 0.0
    %876 = vmatprep.subr.mxu0 0.0
    %877 = vmatpush2.msra.mxu0 0.0
    %878 = vmatprep.subr.mxu0 0.0
    %879 = vmatpush2.msra.mxu0 0.0
    %880 = vmatprep.subr.mxu0 0.0
    %881 = vmatpush2.msra.mxu0 0.0
    %882 = vmatprep.subr.mxu0 0.0
    %883 = vmatpush2.msra.mxu0 0.0
    %884 = vmatprep.subr.mxu0 0.0
    %885 = vmatpush2.msra.mxu0 0.0
    %886 = vmatprep.subr.mxu0 0.0
    %887 = vmatpush2.msra.mxu0 0.0
    %888 = vmatprep.subr.mxu0 0.0
    %889 = vmatpush2.msra.mxu0 0.0
    %890 = vmatprep.subr.mxu0 0.0
    %891 = vmatpush2.msra.mxu0 0.0
    %892 = vmatprep.mubr.f32.mxu0 0.0
    %893 = vmatmul.mubr.f32.gmra.mxu0 %v45
    %v894 = vpop.f32.mrf.mxu0
    %v895 = vadd.f32 %v791, %v894
    %v896 = vpop.f32.mrf.mxu0
    %v897 = vadd.f32 %v795, %v896
    %898 = vmatprep.mubr.f32.mxu0 0.0
    %899 = vmatmul.mubr.f32.gmra.mxu0 %v48
    %v900 = vpop.f32.mrf.mxu0
    %v901 = vadd.f32 %v791, %v900
    %v902 = vpop.f32.mrf.mxu0
    %v903 = vadd.f32 %v795, %v902
    %904 = vdwg.mxu0
    %905 = vmatprep.subr.mxu0 0.0
    %906 = vmatpush1.msra.mxu0 0.0
    %907 = vmatprep.subr.mxu0 0.0
    %908 = vmatpush1.msra.mxu0 0.0
    %909 = vmatprep.subr.mxu0 0.0
    %910 = vmatpush1.msra.mxu0 0.0
    %911 = vmatprep.subr.mxu0 0.0
    %912 = vmatpush1.msra.mxu0 0.0
    %913 = vmatprep.subr.mxu0 0.0
    %914 = vmatpush1.msra.mxu0 0.0
    %915 = vmatprep.subr.mxu0 0.0
    %916 = vmatpush1.msra.mxu0 0.0
    %917 = vmatprep.subr.mxu0 0.0
    %918 = vmatpush1.msra.mxu0 0.0
    %919 = vmatprep.subr.mxu0 0.0
    %920 = vmatpush1.msra.mxu0 0.0
    %921 = vmatprep.subr.mxu0 0.0
    %922 = vmatpush1.msra.mxu0 0.0
    %923 = vmatprep.subr.mxu0 0.0
    %924 = vmatpush1.msra.mxu0 0.0
    %925 = vmatprep.subr.mxu0 0.0
    %926 = vmatpush1.msra.mxu0 0.0
    %927 = vmatprep.subr.mxu0 0.0
    %928 = vmatpush1.msra.mxu0 0.0
    %929 = vmatprep.subr.mxu0 %v781
    %930 = vmatpush1.msra.mxu0 %v780
    %931 = vmatprep.subr.mxu0 %v773
    %932 = vmatpush1.msra.mxu0 %v772
    %933 = vmatprep.subr.mxu0 %v765
    %934 = vmatpush1.msra.mxu0 %v764
    %935 = vmatprep.subr.mxu0 %v757
    %936 = vmatpush1.msra.mxu0 %v756
    %937 = vmatprep.subr.mxu0 0.0
    %938 = vmatpush2.msra.mxu0 0.0
    %939 = vmatprep.subr.mxu0 0.0
    %940 = vmatpush2.msra.mxu0 0.0
    %941 = vmatprep.subr.mxu0 0.0
    %942 = vmatpush2.msra.mxu0 0.0
    %943 = vmatprep.subr.mxu0 0.0
    %944 = vmatpush2.msra.mxu0 0.0
    %945 = vmatprep.subr.mxu0 0.0
    %946 = vmatpush2.msra.mxu0 0.0
    %947 = vmatprep.subr.mxu0 0.0
    %948 = vmatpush2.msra.mxu0 0.0
    %949 = vmatprep.subr.mxu0 0.0
    %950 = vmatpush2.msra.mxu0 0.0
    %951 = vmatprep.subr.mxu0 0.0
    %952 = vmatpush2.msra.mxu0 0.0
    %953 = vmatprep.subr.mxu0 0.0
    %954 = vmatpush2.msra.mxu0 0.0
    %955 = vmatprep.subr.mxu0 0.0
    %956 = vmatpush2.msra.mxu0 0.0
    %957 = vmatprep.subr.mxu0 0.0
    %958 = vmatpush2.msra.mxu0 0.0
    %959 = vmatprep.subr.mxu0 0.0
    %960 = vmatpush2.msra.mxu0 0.0
    %961 = vmatprep.subr.mxu0 0.0
    %962 = vmatpush2.msra.mxu0 0.0
    %963 = vmatprep.subr.mxu0 0.0
    %964 = vmatpush2.msra.mxu0 0.0
    %965 = vmatprep.subr.mxu0 0.0
    %966 = vmatpush2.msra.mxu0 0.0
    %967 = vmatprep.subr.mxu0 0.0
    %968 = vmatpush2.msra.mxu0 0.0
    %969 = vmatprep.mubr.f32.mxu0 0.0
    %970 = vmatmul.mubr.f32.gmra.mxu0 %v45
    %v971 = vpop.f32.mrf.mxu0
    %v972 = vadd.f32 %v799, %v971
    %v973 = vpop.f32.mrf.mxu0
    %v974 = vadd.f32 %v803, %v973
    %975 = vmatprep.mubr.f32.mxu0 0.0
    %976 = vmatmul.mubr.f32.gmra.mxu0 %v48
    %v977 = vpop.f32.mrf.mxu0
    %v978 = vadd.f32 %v799, %v977
    %v979 = vpop.f32.mrf.mxu0
    %v980 = vadd.f32 %v803, %v979
    %981 = vdwg.mxu0
    %982 = vmatprep.subr.mxu0 0.0
    %983 = vmatpush1.msra.mxu0 0.0
    %984 = vmatprep.subr.mxu0 0.0
    %985 = vmatpush1.msra.mxu0 0.0
    %986 = vmatprep.subr.mxu0 0.0
    %987 = vmatpush1.msra.mxu0 0.0
    %988 = vmatprep.subr.mxu0 0.0
    %989 = vmatpush1.msra.mxu0 0.0
    %990 = vmatprep.subr.mxu0 0.0
    %991 = vmatpush1.msra.mxu0 0.0
    %992 = vmatprep.subr.mxu0 0.0
    %993 = vmatpush1.msra.mxu0 0.0
    %994 = vmatprep.subr.mxu0 0.0
    %995 = vmatpush1.msra.mxu0 0.0
    %996 = vmatprep.subr.mxu0 0.0
    %997 = vmatpush1.msra.mxu0 0.0
    %998 = vmatprep.subr.mxu0 0.0
    %999 = vmatpush1.msra.mxu0 0.0
    %1000 = vmatprep.subr.mxu0 0.0
    %1001 = vmatpush1.msra.mxu0 0.0
    %1002 = vmatprep.subr.mxu0 0.0
    %1003 = vmatpush1.msra.mxu0 0.0
    %1004 = vmatprep.subr.mxu0 0.0
    %1005 = vmatpush1.msra.mxu0 0.0
    %1006 = vmatprep.subr.mxu0 %v783
    %1007 = vmatpush1.msra.mxu0 %v782
    %1008 = vmatprep.subr.mxu0 %v775
    %1009 = vmatpush1.msra.mxu0 %v774
    %1010 = vmatprep.subr.mxu0 %v767
    %1011 = vmatpush1.msra.mxu0 %v766
    %1012 = vmatprep.subr.mxu0 %v759
    %1013 = vmatpush1.msra.mxu0 %v758
    %1014 = vmatprep.subr.mxu0 0.0
    %1015 = vmatpush2.msra.mxu0 0.0
    %1016 = vmatprep.subr.mxu0 0.0
    %1017 = vmatpush2.msra.mxu0 0.0
    %1018 = vmatprep.subr.mxu0 0.0
    %1019 = vmatpush2.msra.mxu0 0.0
    %1020 = vmatprep.subr.mxu0 0.0
    %1021 = vmatpush2.msra.mxu0 0.0
    %1022 = vmatprep.subr.mxu0 0.0
    %1023 = vmatpush2.msra.mxu0 0.0
    %1024 = vmatprep.subr.mxu0 0.0
    %1025 = vmatpush2.msra.mxu0 0.0
    %1026 = vmatprep.subr.mxu0 0.0
    %1027 = vmatpush2.msra.mxu0 0.0
    %1028 = vmatprep.subr.mxu0 0.0
    %1029 = vmatpush2.msra.mxu0 0.0
    %1030 = vmatprep.subr.mxu0 0.0
    %1031 = vmatpush2.msra.mxu0 0.0
    %1032 = vmatprep.subr.mxu0 0.0
    %1033 = vmatpush2.msra.mxu0 0.0
    %1034 = vmatprep.subr.mxu0 0.0
    %1035 = vmatpush2.msra.mxu0 0.0
    %1036 = vmatprep.subr.mxu0 0.0
    %1037 = vmatpush2.msra.mxu0 0.0
    %1038 = vmatprep.subr.mxu0 0.0
    %1039 = vmatpush2.msra.mxu0 0.0
    %1040 = vmatprep.subr.mxu0 0.0
    %1041 = vmatpush2.msra.mxu0 0.0
    %1042 = vmatprep.subr.mxu0 0.0
    %1043 = vmatpush2.msra.mxu0 0.0
    %1044 = vmatprep.subr.mxu0 0.0
    %1045 = vmatpush2.msra.mxu0 0.0
    %1046 = vmatprep.mubr.f32.mxu0 0.0
    %1047 = vmatmul.mubr.f32.gmra.mxu0 %v45
    %v1048 = vpop.f32.mrf.mxu0
    %v1049 = vadd.f32 %v807, %v1048
    %v1050 = vpop.f32.mrf.mxu0
    %v1051 = vadd.f32 %v811, %v1050
    %1052 = vmatprep.mubr.f32.mxu0 0.0
    %1053 = vmatmul.mubr.f32.gmra.mxu0 %v48
    %v1054 = vpop.f32.mrf.mxu0
    %v1055 = vadd.f32 %v807, %v1054
    %v1056 = vpop.f32.mrf.mxu0
    %v1057 = vadd.f32 %v811, %v1056
    %1058 = vdwg.mxu0
    %1059 = vmatprep.subr.mxu0 0.0
    %1060 = vmatpush1.msra.mxu0 0.0
    %1061 = vmatprep.subr.mxu0 0.0
    %1062 = vmatpush1.msra.mxu0 0.0
    %1063 = vmatprep.subr.mxu0 0.0
    %1064 = vmatpush1.msra.mxu0 0.0
    %1065 = vmatprep.subr.mxu0 0.0
    %1066 = vmatpush1.msra.mxu0 0.0
    %1067 = vmatprep.subr.mxu0 0.0
    %1068 = vmatpush1.msra.mxu0 0.0
    %1069 = vmatprep.subr.mxu0 0.0
    %1070 = vmatpush1.msra.mxu0 0.0
    %1071 = vmatprep.subr.mxu0 0.0
    %1072 = vmatpush1.msra.mxu0 0.0
    %1073 = vmatprep.subr.mxu0 0.0
    %1074 = vmatpush1.msra.mxu0 0.0
    %1075 = vmatprep.subr.mxu0 0.0
    %1076 = vmatpush1.msra.mxu0 0.0
    %1077 = vmatprep.subr.mxu0 0.0
    %1078 = vmatpush1.msra.mxu0 0.0
    %1079 = vmatprep.subr.mxu0 0.0
    %1080 = vmatpush1.msra.mxu0 0.0
    %1081 = vmatprep.subr.mxu0 0.0
    %1082 = vmatpush1.msra.mxu0 0.0
    %1083 = vmatprep.subr.mxu0 %v785
    %1084 = vmatpush1.msra.mxu0 %v784
    %1085 = vmatprep.subr.mxu0 %v777
    %1086 = vmatpush1.msra.mxu0 %v776
    %1087 = vmatprep.subr.mxu0 %v769
    %1088 = vmatpush1.msra.mxu0 %v768
    %1089 = vmatprep.subr.mxu0 %v761
    %1090 = vmatpush1.msra.mxu0 %v760
    %1091 = vmatprep.subr.mxu0 0.0
    %1092 = vmatpush2.msra.mxu0 0.0
    %1093 = vmatprep.subr.mxu0 0.0
    %1094 = vmatpush2.msra.mxu0 0.0
    %1095 = vmatprep.subr.mxu0 0.0
    %1096 = vmatpush2.msra.mxu0 0.0
    %1097 = vmatprep.subr.mxu0 0.0
    %1098 = vmatpush2.msra.mxu0 0.0
    %1099 = vmatprep.subr.mxu0 0.0
    %1100 = vmatpush2.msra.mxu0 0.0
    %1101 = vmatprep.subr.mxu0 0.0
    %1102 = vmatpush2.msra.mxu0 0.0
    %1103 = vmatprep.subr.mxu0 0.0
    %1104 = vmatpush2.msra.mxu0 0.0
    %1105 = vmatprep.subr.mxu0 0.0
    %1106 = vmatpush2.msra.mxu0 0.0
    %1107 = vmatprep.subr.mxu0 0.0
    %1108 = vmatpush2.msra.mxu0 0.0
    %1109 = vmatprep.subr.mxu0 0.0
    %1110 = vmatpush2.msra.mxu0 0.0
    %1111 = vmatprep.subr.mxu0 0.0
    %1112 = vmatpush2.msra.mxu0 0.0
    %1113 = vmatprep.subr.mxu0 0.0
    %1114 = vmatpush2.msra.mxu0 0.0
    %1115 = vmatprep.subr.mxu0 0.0
    %1116 = vmatpush2.msra.mxu0 0.0
    %1117 = vmatprep.subr.mxu0 0.0
    %1118 = vmatpush2.msra.mxu0 0.0
    %1119 = vmatprep.subr.mxu0 0.0
    %1120 = vmatpush2.msra.mxu0 0.0
    %1121 = vmatprep.subr.mxu0 0.0
    %1122 = vmatpush2.msra.mxu0 0.0
    %1123 = vmatprep.mubr.f32.mxu0 0.0
    %1124 = vmatmul.mubr.f32.gmra.mxu0 %v45
    %v1125 = vpop.f32.mrf.mxu0
    %v1126 = vadd.f32 %v815, %v1125
    %v1127 = vpop.f32.mrf.mxu0
    %v1128 = vadd.f32 %v819, %v1127
    %1129 = vmatprep.mubr.f32.mxu0 0.0
    %1130 = vmatmul.mubr.f32.gmra.mxu0 %v48
    %v1131 = vpop.f32.mrf.mxu0
    %v1132 = vadd.f32 %v815, %v1131
    %v1133 = vpop.f32.mrf.mxu0
    %v1134 = vadd.f32 %v819, %v1133
    %1135 = vdwg.mxu0
    %v1136 = vmax.f32 %v895, 0.0
    %v1137 = vmax.f32 %v897, 0.0
    %v1138 = vmax.f32 %v972, 0.0
    %v1139 = vmax.f32 %v974, 0.0
    %v1140 = vmax.f32 %v1049, 0.0
    %v1141 = vmax.f32 %v1051, 0.0
    %v1142 = vmax.f32 %v1126, 0.0
    %v1143 = vmax.f32 %v1128, 0.0
    %v1144 = vmax.f32 %v901, 0.0
    %v1145 = vmax.f32 %v903, 0.0
    %v1146 = vmax.f32 %v978, 0.0
    %v1147 = vmax.f32 %v980, 0.0
    %v1148 = vmax.f32 %v1055, 0.0
    %v1149 = vmax.f32 %v1057, 0.0
    %v1150 = vmax.f32 %v1132, 0.0
    %v1151 = vmax.f32 %v1134, 0.0
    %v1152 = vld [vmem:[%s5] sm:$0xff]
    %v1153 = vld [vmem:[%s5 + $0x8] sm:$0xff]
    %v1154 = vld [vmem:[%s5 + $0x10] sm:$0xff]
    %v1155 = vld [vmem:[%s5 + $0x18] sm:$0xff]
    %v1156 = vld [vmem:[%s5 + $0x20] sm:$0xff]
    %v1157 = vld [vmem:[%s5 + $0x28] sm:$0xff]
    %v1158 = vld [vmem:[%s5 + $0x30] sm:$0xff]
    %v1159 = vld [vmem:[%s5 + $0x38] sm:$0xff]
    %v1161 = vsel %vm127, %v752, 0
    %v1164 = vsel %vm127, %v753, 0
    %1166 = vmatprep.subr.mxu0 0.0
    %1167 = vmatpush1.msra.mxu0 0.0
    %1168 = vmatprep.subr.mxu0 0.0
    %1169 = vmatpush1.msra.mxu0 0.0
    %1170 = vmatprep.subr.mxu0 0.0
    %1171 = vmatpush1.msra.mxu0 0.0
    %1172 = vmatprep.subr.mxu0 0.0
    %1173 = vmatpush1.msra.mxu0 0.0
    %1174 = vmatprep.subr.mxu0 0.0
    %1175 = vmatpush1.msra.mxu0 0.0
    %1176 = vmatprep.subr.mxu0 0.0
    %1177 = vmatpush1.msra.mxu0 0.0
    %1178 = vmatprep.subr.mxu0 0.0
    %1179 = vmatpush1.msra.mxu0 0.0
    %1180 = vmatprep.subr.mxu0 0.0
    %1181 = vmatpush1.msra.mxu0 0.0
    %1182 = vmatprep.subr.mxu0 0.0
    %1183 = vmatpush1.msra.mxu0 0.0
    %1184 = vmatprep.subr.mxu0 0.0
    %1185 = vmatpush1.msra.mxu0 0.0
    %1186 = vmatprep.subr.mxu0 0.0
    %1187 = vmatpush1.msra.mxu0 0.0
    %1188 = vmatprep.subr.mxu0 0.0
    %1189 = vmatpush1.msra.mxu0 0.0
    %1190 = vmatprep.subr.mxu0 0.0
    %1191 = vmatpush1.msra.mxu0 0.0
    %1192 = vmatprep.subr.mxu0 0.0
    %1193 = vmatpush1.msra.mxu0 0.0
    %1194 = vmatprep.subr.mxu0 0.0
    %1195 = vmatpush1.msra.mxu0 0.0
    %1196 = vmatprep.subr.mxu0 %v1153
    %1197 = vmatpush1.msra.mxu0 %v1152
    %1198 = vmatprep.subr.mxu0 0.0
    %1199 = vmatpush2.msra.mxu0 0.0
    %1200 = vmatprep.subr.mxu0 0.0
    %1201 = vmatpush2.msra.mxu0 0.0
    %1202 = vmatprep.subr.mxu0 0.0
    %1203 = vmatpush2.msra.mxu0 0.0
    %1204 = vmatprep.subr.mxu0 0.0
    %1205 = vmatpush2.msra.mxu0 0.0
    %1206 = vmatprep.subr.mxu0 0.0
    %1207 = vmatpush2.msra.mxu0 0.0
    %1208 = vmatprep.subr.mxu0 0.0
    %1209 = vmatpush2.msra.mxu0 0.0
    %1210 = vmatprep.subr.mxu0 0.0
    %1211 = vmatpush2.msra.mxu0 0.0
    %1212 = vmatprep.subr.mxu0 0.0
    %1213 = vmatpush2.msra.mxu0 0.0
    %1214 = vmatprep.subr.mxu0 0.0
    %1215 = vmatpush2.msra.mxu0 0.0
    %1216 = vmatprep.subr.mxu0 0.0
    %1217 = vmatpush2.msra.mxu0 0.0
    %1218 = vmatprep.subr.mxu0 0.0
    %1219 = vmatpush2.msra.mxu0 0.0
    %1220 = vmatprep.subr.mxu0 0.0
    %1221 = vmatpush2.msra.mxu0 0.0
    %1222 = vmatprep.subr.mxu0 0.0
    %1223 = vmatpush2.msra.mxu0 0.0
    %1224 = vmatprep.subr.mxu0 0.0
    %1225 = vmatpush2.msra.mxu0 0.0
    %1226 = vmatprep.subr.mxu0 0.0
    %1227 = vmatpush2.msra.mxu0 0.0
    %1228 = vmatprep.subr.mxu0 0.0
    %1229 = vmatpush2.msra.mxu0 0.0
    %1230 = vmatprep.mubr.f32.mxu0 0.0
    %1231 = vmatmul.mubr.f32.gmra.mxu0 %v1161
    %v1232 = vpop.f32.mrf.mxu0
    %v1233 = vadd.f32 0.0, %v1232
    %v1234 = vpop.f32.mrf.mxu0
    %v1235 = vadd.f32 0.0, %v1234
    %1236 = vmatprep.mubr.f32.mxu0 0.0
    %1237 = vmatmul.mubr.f32.gmra.mxu0 %v1164
    %v1238 = vpop.f32.mrf.mxu0
    %v1239 = vadd.f32 0.0, %v1238
    %v1240 = vpop.f32.mrf.mxu0
    %v1241 = vadd.f32 0.0, %v1240
    %1242 = vdwg.mxu0
    %1243 = vmatprep.subr.mxu0 0.0
    %1244 = vmatpush1.msra.mxu0 0.0
    %1245 = vmatprep.subr.mxu0 0.0
    %1246 = vmatpush1.msra.mxu0 0.0
    %1247 = vmatprep.subr.mxu0 0.0
    %1248 = vmatpush1.msra.mxu0 0.0
    %1249 = vmatprep.subr.mxu0 0.0
    %1250 = vmatpush1.msra.mxu0 0.0
    %1251 = vmatprep.subr.mxu0 0.0
    %1252 = vmatpush1.msra.mxu0 0.0
    %1253 = vmatprep.subr.mxu0 0.0
    %1254 = vmatpush1.msra.mxu0 0.0
    %1255 = vmatprep.subr.mxu0 0.0
    %1256 = vmatpush1.msra.mxu0 0.0
    %1257 = vmatprep.subr.mxu0 0.0
    %1258 = vmatpush1.msra.mxu0 0.0
    %1259 = vmatprep.subr.mxu0 0.0
    %1260 = vmatpush1.msra.mxu0 0.0
    %1261 = vmatprep.subr.mxu0 0.0
    %1262 = vmatpush1.msra.mxu0 0.0
    %1263 = vmatprep.subr.mxu0 0.0
    %1264 = vmatpush1.msra.mxu0 0.0
    %1265 = vmatprep.subr.mxu0 0.0
    %1266 = vmatpush1.msra.mxu0 0.0
    %1267 = vmatprep.subr.mxu0 0.0
    %1268 = vmatpush1.msra.mxu0 0.0
    %1269 = vmatprep.subr.mxu0 0.0
    %1270 = vmatpush1.msra.mxu0 0.0
    %1271 = vmatprep.subr.mxu0 0.0
    %1272 = vmatpush1.msra.mxu0 0.0
    %1273 = vmatprep.subr.mxu0 %v1155
    %1274 = vmatpush1.msra.mxu0 %v1154
    %1275 = vmatprep.subr.mxu0 0.0
    %1276 = vmatpush2.msra.mxu0 0.0
    %1277 = vmatprep.subr.mxu0 0.0
    %1278 = vmatpush2.msra.mxu0 0.0
    %1279 = vmatprep.subr.mxu0 0.0
    %1280 = vmatpush2.msra.mxu0 0.0
    %1281 = vmatprep.subr.mxu0 0.0
    %1282 = vmatpush2.msra.mxu0 0.0
    %1283 = vmatprep.subr.mxu0 0.0
    %1284 = vmatpush2.msra.mxu0 0.0
    %1285 = vmatprep.subr.mxu0 0.0
    %1286 = vmatpush2.msra.mxu0 0.0
    %1287 = vmatprep.subr.mxu0 0.0
    %1288 = vmatpush2.msra.mxu0 0.0
    %1289 = vmatprep.subr.mxu0 0.0
    %1290 = vmatpush2.msra.mxu0 0.0
    %1291 = vmatprep.subr.mxu0 0.0
    %1292 = vmatpush2.msra.mxu0 0.0
    %1293 = vmatprep.subr.mxu0 0.0
    %1294 = vmatpush2.msra.mxu0 0.0
    %1295 = vmatprep.subr.mxu0 0.0
    %1296 = vmatpush2.msra.mxu0 0.0
    %1297 = vmatprep.subr.mxu0 0.0
    %1298 = vmatpush2.msra.mxu0 0.0
    %1299 = vmatprep.subr.mxu0 0.0
    %1300 = vmatpush2.msra.mxu0 0.0
    %1301 = vmatprep.subr.mxu0 0.0
    %1302 = vmatpush2.msra.mxu0 0.0
    %1303 = vmatprep.subr.mxu0 0.0
    %1304 = vmatpush2.msra.mxu0 0.0
    %1305 = vmatprep.subr.mxu0 0.0
    %1306 = vmatpush2.msra.mxu0 0.0
    %1307 = vmatprep.mubr.f32.mxu0 0.0
    %1308 = vmatmul.mubr.f32.gmra.mxu0 %v1161
    %v1309 = vpop.f32.mrf.mxu0
    %v1310 = vadd.f32 0.0, %v1309
    %v1311 = vpop.f32.mrf.mxu0
    %v1312 = vadd.f32 0.0, %v1311
    %1313 = vmatprep.mubr.f32.mxu0 0.0
    %1314 = vmatmul.mubr.f32.gmra.mxu0 %v1164
    %v1315 = vpop.f32.mrf.mxu0
    %v1316 = vadd.f32 0.0, %v1315
    %v1317 = vpop.f32.mrf.mxu0
    %v1318 = vadd.f32 0.0, %v1317
    %1319 = vdwg.mxu0
    %1320 = vmatprep.subr.mxu0 0.0
    %1321 = vmatpush1.msra.mxu0 0.0
    %1322 = vmatprep.subr.mxu0 0.0
    %1323 = vmatpush1.msra.mxu0 0.0
    %1324 = vmatprep.subr.mxu0 0.0
    %1325 = vmatpush1.msra.mxu0 0.0
    %1326 = vmatprep.subr.mxu0 0.0
    %1327 = vmatpush1.msra.mxu0 0.0
    %1328 = vmatprep.subr.mxu0 0.0
    %1329 = vmatpush1.msra.mxu0 0.0
    %1330 = vmatprep.subr.mxu0 0.0
    %1331 = vmatpush1.msra.mxu0 0.0
    %1332 = vmatprep.subr.mxu0 0.0
    %1333 = vmatpush1.msra.mxu0 0.0
    %1334 = vmatprep.subr.mxu0 0.0
    %1335 = vmatpush1.msra.mxu0 0.0
    %1336 = vmatprep.subr.mxu0 0.0
    %1337 = vmatpush1.msra.mxu0 0.0
    %1338 = vmatprep.subr.mxu0 0.0
    %1339 = vmatpush1.msra.mxu0 0.0
    %1340 = vmatprep.subr.mxu0 0.0
    %1341 = vmatpush1.msra.mxu0 0.0
    %1342 = vmatprep.subr.mxu0 0.0
    %1343 = vmatpush1.msra.mxu0 0.0
    %1344 = vmatprep.subr.mxu0 0.0
    %1345 = vmatpush1.msra.mxu0 0.0
    %1346 = vmatprep.subr.mxu0 0.0
    %1347 = vmatpush1.msra.mxu0 0.0
    %1348 = vmatprep.subr.mxu0 0.0
    %1349 = vmatpush1.msra.mxu0 0.0
    %1350 = vmatprep.subr.mxu0 %v1157
    %1351 = vmatpush1.msra.mxu0 %v1156
    %1352 = vmatprep.subr.mxu0 0.0
    %1353 = vmatpush2.msra.mxu0 0.0
    %1354 = vmatprep.subr.mxu0 0.0
    %1355 = vmatpush2.msra.mxu0 0.0
    %1356 = vmatprep.subr.mxu0 0.0
    %1357 = vmatpush2.msra.mxu0 0.0
    %1358 = vmatprep.subr.mxu0 0.0
    %1359 = vmatpush2.msra.mxu0 0.0
    %1360 = vmatprep.subr.mxu0 0.0
    %1361 = vmatpush2.msra.mxu0 0.0
    %1362 = vmatprep.subr.mxu0 0.0
    %1363 = vmatpush2.msra.mxu0 0.0
    %1364 = vmatprep.subr.mxu0 0.0
    %1365 = vmatpush2.msra.mxu0 0.0
    %1366 = vmatprep.subr.mxu0 0.0
    %1367 = vmatpush2.msra.mxu0 0.0
    %1368 = vmatprep.subr.mxu0 0.0
    %1369 = vmatpush2.msra.mxu0 0.0
    %1370 = vmatprep.subr.mxu0 0.0
    %1371 = vmatpush2.msra.mxu0 0.0
    %1372 = vmatprep.subr.mxu0 0.0
    %1373 = vmatpush2.msra.mxu0 0.0
    %1374 = vmatprep.subr.mxu0 0.0
    %1375 = vmatpush2.msra.mxu0 0.0
    %1376 = vmatprep.subr.mxu0 0.0
    %1377 = vmatpush2.msra.mxu0 0.0
    %1378 = vmatprep.subr.mxu0 0.0
    %1379 = vmatpush2.msra.mxu0 0.0
    %1380 = vmatprep.subr.mxu0 0.0
    %1381 = vmatpush2.msra.mxu0 0.0
    %1382 = vmatprep.subr.mxu0 0.0
    %1383 = vmatpush2.msra.mxu0 0.0
    %1384 = vmatprep.mubr.f32.mxu0 0.0
    %1385 = vmatmul.mubr.f32.gmra.mxu0 %v1161
    %v1386 = vpop.f32.mrf.mxu0
    %v1387 = vadd.f32 0.0, %v1386
    %v1388 = vpop.f32.mrf.mxu0
    %v1389 = vadd.f32 0.0, %v1388
    %1390 = vmatprep.mubr.f32.mxu0 0.0
    %1391 = vmatmul.mubr.f32.gmra.mxu0 %v1164
    %v1392 = vpop.f32.mrf.mxu0
    %v1393 = vadd.f32 0.0, %v1392
    %v1394 = vpop.f32.mrf.mxu0
    %v1395 = vadd.f32 0.0, %v1394
    %1396 = vdwg.mxu0
    %1397 = vmatprep.subr.mxu0 0.0
    %1398 = vmatpush1.msra.mxu0 0.0
    %1399 = vmatprep.subr.mxu0 0.0
    %1400 = vmatpush1.msra.mxu0 0.0
    %1401 = vmatprep.subr.mxu0 0.0
    %1402 = vmatpush1.msra.mxu0 0.0
    %1403 = vmatprep.subr.mxu0 0.0
    %1404 = vmatpush1.msra.mxu0 0.0
    %1405 = vmatprep.subr.mxu0 0.0
    %1406 = vmatpush1.msra.mxu0 0.0
    %1407 = vmatprep.subr.mxu0 0.0
    %1408 = vmatpush1.msra.mxu0 0.0
    %1409 = vmatprep.subr.mxu0 0.0
    %1410 = vmatpush1.msra.mxu0 0.0
    %1411 = vmatprep.subr.mxu0 0.0
    %1412 = vmatpush1.msra.mxu0 0.0
    %1413 = vmatprep.subr.mxu0 0.0
    %1414 = vmatpush1.msra.mxu0 0.0
    %1415 = vmatprep.subr.mxu0 0.0
    %1416 = vmatpush1.msra.mxu0 0.0
    %1417 = vmatprep.subr.mxu0 0.0
    %1418 = vmatpush1.msra.mxu0 0.0
    %1419 = vmatprep.subr.mxu0 0.0
    %1420 = vmatpush1.msra.mxu0 0.0
    %1421 = vmatprep.subr.mxu0 0.0
    %1422 = vmatpush1.msra.mxu0 0.0
    %1423 = vmatprep.subr.mxu0 0.0
    %1424 = vmatpush1.msra.mxu0 0.0
    %1425 = vmatprep.subr.mxu0 0.0
    %1426 = vmatpush1.msra.mxu0 0.0
    %1427 = vmatprep.subr.mxu0 %v1159
    %1428 = vmatpush1.msra.mxu0 %v1158
    %1429 = vmatprep.subr.mxu0 0.0
    %1430 = vmatpush2.msra.mxu0 0.0
    %1431 = vmatprep.subr.mxu0 0.0
    %1432 = vmatpush2.msra.mxu0 0.0
    %1433 = vmatprep.subr.mxu0 0.0
    %1434 = vmatpush2.msra.mxu0 0.0
    %1435 = vmatprep.subr.mxu0 0.0
    %1436 = vmatpush2.msra.mxu0 0.0
    %1437 = vmatprep.subr.mxu0 0.0
    %1438 = vmatpush2.msra.mxu0 0.0
    %1439 = vmatprep.subr.mxu0 0.0
    %1440 = vmatpush2.msra.mxu0 0.0
    %1441 = vmatprep.subr.mxu0 0.0
    %1442 = vmatpush2.msra.mxu0 0.0
    %1443 = vmatprep.subr.mxu0 0.0
    %1444 = vmatpush2.msra.mxu0 0.0
    %1445 = vmatprep.subr.mxu0 0.0
    %1446 = vmatpush2.msra.mxu0 0.0
    %1447 = vmatprep.subr.mxu0 0.0
    %1448 = vmatpush2.msra.mxu0 0.0
    %1449 = vmatprep.subr.mxu0 0.0
    %1450 = vmatpush2.msra.mxu0 0.0
    %1451 = vmatprep.subr.mxu0 0.0
    %1452 = vmatpush2.msra.mxu0 0.0
    %1453 = vmatprep.subr.mxu0 0.0
    %1454 = vmatpush2.msra.mxu0 0.0
    %1455 = vmatprep.subr.mxu0 0.0
    %1456 = vmatpush2.msra.mxu0 0.0
    %1457 = vmatprep.subr.mxu0 0.0
    %1458 = vmatpush2.msra.mxu0 0.0
    %1459 = vmatprep.subr.mxu0 0.0
    %1460 = vmatpush2.msra.mxu0 0.0
    %1461 = vmatprep.mubr.f32.mxu0 0.0
    %1462 = vmatmul.mubr.f32.gmra.mxu0 %v1161
    %v1463 = vpop.f32.mrf.mxu0
    %v1464 = vadd.f32 0.0, %v1463
    %v1465 = vpop.f32.mrf.mxu0
    %v1466 = vadd.f32 0.0, %v1465
    %1467 = vmatprep.mubr.f32.mxu0 0.0
    %1468 = vmatmul.mubr.f32.gmra.mxu0 %v1164
    %v1469 = vpop.f32.mrf.mxu0
    %v1470 = vadd.f32 0.0, %v1469
    %v1471 = vpop.f32.mrf.mxu0
    %v1472 = vadd.f32 0.0, %v1471
    %1473 = vdwg.mxu0
    %v1474 = vmul.f32 %v1136, %v1233
    %v1475 = vmul.f32 %v1137, %v1235
    %v1476 = vmul.f32 %v1138, %v1310
    %v1477 = vmul.f32 %v1139, %v1312
    %v1478 = vmul.f32 %v1140, %v1387
    %v1479 = vmul.f32 %v1141, %v1389
    %v1480 = vmul.f32 %v1142, %v1464
    %v1481 = vmul.f32 %v1143, %v1466
    %v1482 = vmul.f32 %v1144, %v1239
    %v1483 = vmul.f32 %v1145, %v1241
    %v1484 = vmul.f32 %v1146, %v1316
    %v1485 = vmul.f32 %v1147, %v1318
    %v1486 = vmul.f32 %v1148, %v1393
    %v1487 = vmul.f32 %v1149, %v1395
    %v1488 = vmul.f32 %v1150, %v1470
    %v1489 = vmul.f32 %v1151, %v1472
    %v1490 = vld [vmem:[%s6] sm:$0xff]
    %v1491 = vld [vmem:[%s6 + $0x8] sm:$0xff]
    %v1492 = vld [vmem:[%s6 + $0x10] sm:$0xff]
    %v1493 = vld [vmem:[%s6 + $0x18] sm:$0xff]
    %v1494 = vld [vmem:[%s6 + $0x20] sm:$0xff]
    %v1495 = vld [vmem:[%s6 + $0x28] sm:$0xff]
    %v1496 = vld [vmem:[%s6 + $0x30] sm:$0xff]
    %v1497 = vld [vmem:[%s6 + $0x38] sm:$0xff]
    %v1498 = vld [vmem:[%s6 + $0x40] sm:$0xff]
    %v1499 = vld [vmem:[%s6 + $0x48] sm:$0xff]
    %v1500 = vld [vmem:[%s6 + $0x50] sm:$0xff]
    %v1501 = vld [vmem:[%s6 + $0x58] sm:$0xff]
    %v1502 = vld [vmem:[%s6 + $0x60] sm:$0xff]
    %v1503 = vld [vmem:[%s6 + $0x68] sm:$0xff]
    %v1504 = vld [vmem:[%s6 + $0x70] sm:$0xff]
    %v1505 = vld [vmem:[%s6 + $0x78] sm:$0xff]
    %v1506 = vld [vmem:[%s6 + $0x80] sm:$0xff]
    %v1507 = vld [vmem:[%s6 + $0x88] sm:$0xff]
    %v1508 = vld [vmem:[%s6 + $0x90] sm:$0xff]
    %v1509 = vld [vmem:[%s6 + $0x98] sm:$0xff]
    %v1510 = vld [vmem:[%s6 + $0xa0] sm:$0xff]
    %v1511 = vld [vmem:[%s6 + $0xa8] sm:$0xff]
    %v1512 = vld [vmem:[%s6 + $0xb0] sm:$0xff]
    %v1513 = vld [vmem:[%s6 + $0xb8] sm:$0xff]
    %v1514 = vld [vmem:[%s6 + $0xc0] sm:$0xff]
    %v1515 = vld [vmem:[%s6 + $0xc8] sm:$0xff]
    %v1516 = vld [vmem:[%s6 + $0xd0] sm:$0xff]
    %v1517 = vld [vmem:[%s6 + $0xd8] sm:$0xff]
    %v1518 = vld [vmem:[%s6 + $0xe0] sm:$0xff]
    %v1519 = vld [vmem:[%s6 + $0xe8] sm:$0xff]
    %v1520 = vld [vmem:[%s6 + $0xf0] sm:$0xff]
    %v1521 = vld [vmem:[%s6 + $0xf8] sm:$0xff]
    %v1522 = vld [vmem:[%s6 + $0x100] sm:$0xff]
    %v1523 = vld [vmem:[%s6 + $0x108] sm:$0xff]
    %v1524 = vld [vmem:[%s6 + $0x110] sm:$0xff]
    %v1525 = vld [vmem:[%s6 + $0x118] sm:$0xff]
    %v1526 = vld [vmem:[%s6 + $0x120] sm:$0xff]
    %v1527 = vld [vmem:[%s6 + $0x128] sm:$0xff]
    %v1528 = vld [vmem:[%s6 + $0x130] sm:$0xff]
    %v1529 = vld [vmem:[%s6 + $0x138] sm:$0xff]
    %v1530 = vld [vmem:[%s6 + $0x140] sm:$0xff]
    %v1531 = vld [vmem:[%s6 + $0x148] sm:$0xff]
    %v1532 = vld [vmem:[%s6 + $0x150] sm:$0xff]
    %v1533 = vld [vmem:[%s6 + $0x158] sm:$0xff]
    %v1534 = vld [vmem:[%s6 + $0x160] sm:$0xff]
    %v1535 = vld [vmem:[%s6 + $0x168] sm:$0xff]
    %v1536 = vld [vmem:[%s6 + $0x170] sm:$0xff]
    %v1537 = vld [vmem:[%s6 + $0x178] sm:$0xff]
    %v1538 = vld [vmem:[%s6 + $0x180] sm:$0xff]
    %v1539 = vld [vmem:[%s6 + $0x188] sm:$0xff]
    %v1540 = vld [vmem:[%s6 + $0x190] sm:$0xff]
    %v1541 = vld [vmem:[%s6 + $0x198] sm:$0xff]
    %v1542 = vld [vmem:[%s6 + $0x1a0] sm:$0xff]
    %v1543 = vld [vmem:[%s6 + $0x1a8] sm:$0xff]
    %v1544 = vld [vmem:[%s6 + $0x1b0] sm:$0xff]
    %v1545 = vld [vmem:[%s6 + $0x1b8] sm:$0xff]
    %v1546 = vld [vmem:[%s6 + $0x1c0] sm:$0xff]
    %v1547 = vld [vmem:[%s6 + $0x1c8] sm:$0xff]
    %v1548 = vld [vmem:[%s6 + $0x1d0] sm:$0xff]
    %v1549 = vld [vmem:[%s6 + $0x1d8] sm:$0xff]
    %v1550 = vld [vmem:[%s6 + $0x1e0] sm:$0xff]
    %v1551 = vld [vmem:[%s6 + $0x1e8] sm:$0xff]
    %v1552 = vld [vmem:[%s6 + $0x1f0] sm:$0xff]
    %v1553 = vld [vmem:[%s6 + $0x1f8] sm:$0xff]
    %v1554 = vld [vmem:[%s6 + $0x200] sm:$0xff]
    %v1555 = vld [vmem:[%s6 + $0x208] sm:$0xff]
    %v1556 = vld [vmem:[%s6 + $0x210] sm:$0xff]
    %v1557 = vld [vmem:[%s6 + $0x218] sm:$0xff]
    %v1558 = vld [vmem:[%s6 + $0x220] sm:$0xff]
    %v1559 = vld [vmem:[%s6 + $0x228] sm:$0xff]
    %v1560 = vld [vmem:[%s6 + $0x230] sm:$0xff]
    %v1561 = vld [vmem:[%s6 + $0x238] sm:$0xff]
    %v1562 = vld [vmem:[%s6 + $0x240] sm:$0xff]
    %v1563 = vld [vmem:[%s6 + $0x248] sm:$0xff]
    %v1564 = vld [vmem:[%s6 + $0x250] sm:$0xff]
    %v1565 = vld [vmem:[%s6 + $0x258] sm:$0xff]
    %v1566 = vld [vmem:[%s6 + $0x260] sm:$0xff]
    %v1567 = vld [vmem:[%s6 + $0x268] sm:$0xff]
    %v1568 = vld [vmem:[%s6 + $0x270] sm:$0xff]
    %v1569 = vld [vmem:[%s6 + $0x278] sm:$0xff]
    %v1570 = vld [vmem:[%s6 + $0x280] sm:$0xff]
    %v1571 = vld [vmem:[%s6 + $0x288] sm:$0xff]
    %v1572 = vld [vmem:[%s6 + $0x290] sm:$0xff]
    %v1573 = vld [vmem:[%s6 + $0x298] sm:$0xff]
    %v1574 = vld [vmem:[%s6 + $0x2a0] sm:$0xff]
    %v1575 = vld [vmem:[%s6 + $0x2a8] sm:$0xff]
    %v1576 = vld [vmem:[%s6 + $0x2b0] sm:$0xff]
    %v1577 = vld [vmem:[%s6 + $0x2b8] sm:$0xff]
    %v1578 = vld [vmem:[%s6 + $0x2c0] sm:$0xff]
    %v1579 = vld [vmem:[%s6 + $0x2c8] sm:$0xff]
    %v1580 = vld [vmem:[%s6 + $0x2d0] sm:$0xff]
    %v1581 = vld [vmem:[%s6 + $0x2d8] sm:$0xff]
    %v1582 = vld [vmem:[%s6 + $0x2e0] sm:$0xff]
    %v1583 = vld [vmem:[%s6 + $0x2e8] sm:$0xff]
    %v1584 = vld [vmem:[%s6 + $0x2f0] sm:$0xff]
    %v1585 = vld [vmem:[%s6 + $0x2f8] sm:$0xff]
    %v1586 = vld [vmem:[%s6 + $0x300] sm:$0xff]
    %v1587 = vld [vmem:[%s6 + $0x308] sm:$0xff]
    %v1588 = vld [vmem:[%s6 + $0x310] sm:$0xff]
    %v1589 = vld [vmem:[%s6 + $0x318] sm:$0xff]
    %v1590 = vld [vmem:[%s6 + $0x320] sm:$0xff]
    %v1591 = vld [vmem:[%s6 + $0x328] sm:$0xff]
    %v1592 = vld [vmem:[%s6 + $0x330] sm:$0xff]
    %v1593 = vld [vmem:[%s6 + $0x338] sm:$0xff]
    %v1594 = vld [vmem:[%s6 + $0x340] sm:$0xff]
    %v1595 = vld [vmem:[%s6 + $0x348] sm:$0xff]
    %v1596 = vld [vmem:[%s6 + $0x350] sm:$0xff]
    %v1597 = vld [vmem:[%s6 + $0x358] sm:$0xff]
    %v1598 = vld [vmem:[%s6 + $0x360] sm:$0xff]
    %v1599 = vld [vmem:[%s6 + $0x368] sm:$0xff]
    %v1600 = vld [vmem:[%s6 + $0x370] sm:$0xff]
    %v1601 = vld [vmem:[%s6 + $0x378] sm:$0xff]
    %v1602 = vld [vmem:[%s6 + $0x380] sm:$0xff]
    %v1603 = vld [vmem:[%s6 + $0x388] sm:$0xff]
    %v1604 = vld [vmem:[%s6 + $0x390] sm:$0xff]
    %v1605 = vld [vmem:[%s6 + $0x398] sm:$0xff]
    %v1606 = vld [vmem:[%s6 + $0x3a0] sm:$0xff]
    %v1607 = vld [vmem:[%s6 + $0x3a8] sm:$0xff]
    %v1608 = vld [vmem:[%s6 + $0x3b0] sm:$0xff]
    %v1609 = vld [vmem:[%s6 + $0x3b8] sm:$0xff]
    %v1610 = vld [vmem:[%s6 + $0x3c0] sm:$0xff]
    %v1611 = vld [vmem:[%s6 + $0x3c8] sm:$0xff]
    %v1612 = vld [vmem:[%s6 + $0x3d0] sm:$0xff]
    %v1613 = vld [vmem:[%s6 + $0x3d8] sm:$0xff]
    %v1614 = vld [vmem:[%s6 + $0x3e0] sm:$0xff]
    %v1615 = vld [vmem:[%s6 + $0x3e8] sm:$0xff]
    %v1616 = vld [vmem:[%s6 + $0x3f0] sm:$0xff]
    %v1617 = vld [vmem:[%s6 + $0x3f8] sm:$0xff]
    %v1618 = vld [vmem:[%s7] sm:$0xff]
    %1619 = vmatprep.subr.mxu0 0.0
    %1620 = vmatpush1.msra.mxu0 0.0
    %1621 = vmatprep.subr.mxu0 0.0
    %1622 = vmatpush1.msra.mxu0 0.0
    %1623 = vmatprep.subr.mxu0 0.0
    %1624 = vmatpush1.msra.mxu0 0.0
    %1625 = vmatprep.subr.mxu0 0.0
    %1626 = vmatpush1.msra.mxu0 0.0
    %1627 = vmatprep.subr.mxu0 0.0
    %1628 = vmatpush1.msra.mxu0 0.0
    %1629 = vmatprep.subr.mxu0 0.0
    %1630 = vmatpush1.msra.mxu0 0.0
    %1631 = vmatprep.subr.mxu0 0.0
    %1632 = vmatpush1.msra.mxu0 0.0
    %1633 = vmatprep.subr.mxu0 0.0
    %1634 = vmatpush1.msra.mxu0 0.0
    %1635 = vmatprep.subr.mxu0 0.0
    %1636 = vmatpush1.msra.mxu0 0.0
    %1637 = vmatprep.subr.mxu0 0.0
    %1638 = vmatpush1.msra.mxu0 0.0
    %1639 = vmatprep.subr.mxu0 0.0
    %1640 = vmatpush1.msra.mxu0 0.0
    %1641 = vmatprep.subr.mxu0 0.0
    %1642 = vmatpush1.msra.mxu0 0.0
    %1643 = vmatprep.subr.mxu0 0.0
    %1644 = vmatpush1.msra.mxu0 0.0
    %1645 = vmatprep.subr.mxu0 0.0
    %1646 = vmatpush1.msra.mxu0 0.0
    %1647 = vmatprep.subr.mxu0 0.0
    %1648 = vmatpush1.msra.mxu0 0.0
    %1649 = vmatprep.subr.mxu0 0.0
    %1650 = vmatpush1.msra.mxu0 %v1618
    %1651 = vmatprep.subr.mxu0 0.0
    %1652 = vmatpush2.msra.mxu0 0.0
    %1653 = vmatprep.subr.mxu0 0.0
    %1654 = vmatpush2.msra.mxu0 0.0
    %1655 = vmatprep.subr.mxu0 0.0
    %1656 = vmatpush2.msra.mxu0 0.0
    %1657 = vmatprep.subr.mxu0 0.0
    %1658 = vmatpush2.msra.mxu0 0.0
    %1659 = vmatprep.subr.mxu0 0.0
    %1660 = vmatpush2.msra.mxu0 0.0
    %1661 = vmatprep.subr.mxu0 0.0
    %1662 = vmatpush2.msra.mxu0 0.0
    %1663 = vmatprep.subr.mxu0 0.0
    %1664 = vmatpush2.msra.mxu0 0.0
    %1665 = vmatprep.subr.mxu0 0.0
    %1666 = vmatpush2.msra.mxu0 0.0
    %1667 = vmatprep.subr.mxu0 0.0
    %1668 = vmatpush2.msra.mxu0 0.0
    %1669 = vmatprep.subr.mxu0 0.0
    %1670 = vmatpush2.msra.mxu0 0.0
    %1671 = vmatprep.subr.mxu0 0.0
    %1672 = vmatpush2.msra.mxu0 0.0
    %1673 = vmatprep.subr.mxu0 0.0
    %1674 = vmatpush2.msra.mxu0 0.0
    %1675 = vmatprep.subr.mxu0 0.0
    %1676 = vmatpush2.msra.mxu0 0.0
    %1677 = vmatprep.subr.mxu0 0.0
    %1678 = vmatpush2.msra.mxu0 0.0
    %1679 = vmatprep.subr.mxu0 0.0
    %1680 = vmatpush2.msra.mxu0 0.0
    %1681 = vmatprep.subr.mxu0 0.0
    %1682 = vmatpush2.msra.mxu0 0.0
    %1683 = vmatprep.mubr.f32.mxu0 0.0
    %1684 = vmatmul.mubr.f32.gmra.mxu0 %v1161
    %v1685 = vpop.f32.mrf.mxu0
    %v1686 = vadd.f32 0.0, %v1685
    %v1687 = vpop.f32.mrf.mxu0
    %1688 = vmatprep.mubr.f32.mxu0 0.0
    %1689 = vmatmul.mubr.f32.gmra.mxu0 %v1164
    %v1690 = vpop.f32.mrf.mxu0
    %v1691 = vadd.f32 0.0, %v1690
    %v1692 = vpop.f32.mrf.mxu0
    %1693 = vdwg.mxu0
    %1694 = vmatprep.subr.mxu0 0.0
    %1695 = vmatpush1.msra.mxu0 %v1505
    %1696 = vmatprep.subr.mxu0 0.0
    %1697 = vmatpush1.msra.mxu0 %v1504
    %1698 = vmatprep.subr.mxu0 0.0
    %1699 = vmatpush1.msra.mxu0 %v1503
    %1700 = vmatprep.subr.mxu0 0.0
    %1701 = vmatpush1.msra.mxu0 %v1502
    %1702 = vmatprep.subr.mxu0 0.0
    %1703 = vmatpush1.msra.mxu0 %v1501
    %1704 = vmatprep.subr.mxu0 0.0
    %1705 = vmatpush1.msra.mxu0 %v1500
    %1706 = vmatprep.subr.mxu0 0.0
    %1707 = vmatpush1.msra.mxu0 %v1499
    %1708 = vmatprep.subr.mxu0 0.0
    %1709 = vmatpush1.msra.mxu0 %v1498
    %1710 = vmatprep.subr.mxu0 0.0
    %1711 = vmatpush1.msra.mxu0 %v1497
    %1712 = vmatprep.subr.mxu0 0.0
    %1713 = vmatpush1.msra.mxu0 %v1496
    %1714 = vmatprep.subr.mxu0 0.0
    %1715 = vmatpush1.msra.mxu0 %v1495
    %1716 = vmatprep.subr.mxu0 0.0
    %1717 = vmatpush1.msra.mxu0 %v1494
    %1718 = vmatprep.subr.mxu0 0.0
    %1719 = vmatpush1.msra.mxu0 %v1493
    %1720 = vmatprep.subr.mxu0 0.0
    %1721 = vmatpush1.msra.mxu0 %v1492
    %1722 = vmatprep.subr.mxu0 0.0
    %1723 = vmatpush1.msra.mxu0 %v1491
    %1724 = vmatprep.subr.mxu0 0.0
    %1725 = vmatpush1.msra.mxu0 %v1490
    %1726 = vmatprep.subr.mxu0 0.0
    %1727 = vmatpush2.msra.mxu0 %v1521
    %1728 = vmatprep.subr.mxu0 0.0
    %1729 = vmatpush2.msra.mxu0 %v1520
    %1730 = vmatprep.subr.mxu0 0.0
    %1731 = vmatpush2.msra.mxu0 %v1519
    %1732 = vmatprep.subr.mxu0 0.0
    %1733 = vmatpush2.msra.mxu0 %v1518
    %1734 = vmatprep.subr.mxu0 0.0
    %1735 = vmatpush2.msra.mxu0 %v1517
    %1736 = vmatprep.subr.mxu0 0.0
    %1737 = vmatpush2.msra.mxu0 %v1516
    %1738 = vmatprep.subr.mxu0 0.0
    %1739 = vmatpush2.msra.mxu0 %v1515
    %1740 = vmatprep.subr.mxu0 0.0
    %1741 = vmatpush2.msra.mxu0 %v1514
    %1742 = vmatprep.subr.mxu0 0.0
    %1743 = vmatpush2.msra.mxu0 %v1513
    %1744 = vmatprep.subr.mxu0 0.0
    %1745 = vmatpush2.msra.mxu0 %v1512
    %1746 = vmatprep.subr.mxu0 0.0
    %1747 = vmatpush2.msra.mxu0 %v1511
    %1748 = vmatprep.subr.mxu0 0.0
    %1749 = vmatpush2.msra.mxu0 %v1510
    %1750 = vmatprep.subr.mxu0 0.0
    %1751 = vmatpush2.msra.mxu0 %v1509
    %1752 = vmatprep.subr.mxu0 0.0
    %1753 = vmatpush2.msra.mxu0 %v1508
    %1754 = vmatprep.subr.mxu0 0.0
    %1755 = vmatpush2.msra.mxu0 %v1507
    %1756 = vmatprep.subr.mxu0 0.0
    %1757 = vmatpush2.msra.mxu0 %v1506
    %1758 = vmatprep.mubr.f32.mxu0 %v1475
    %1759 = vmatmul.mubr.f32.gmra.mxu0 %v1474
    %v1760 = vpop.f32.mrf.mxu0
    %v1761 = vadd.f32 %v1686, %v1760
    %v1762 = vpop.f32.mrf.mxu0
    %1763 = vmatprep.mubr.f32.mxu0 %v1483
    %1764 = vmatmul.mubr.f32.gmra.mxu0 %v1482
    %v1765 = vpop.f32.mrf.mxu0
    %v1766 = vadd.f32 %v1691, %v1765
    %v1767 = vpop.f32.mrf.mxu0
    %1768 = vdwg.mxu0
    %1769 = vmatprep.subr.mxu0 0.0
    %1770 = vmatpush1.msra.mxu0 %v1537
    %1771 = vmatprep.subr.mxu0 0.0
    %1772 = vmatpush1.msra.mxu0 %v1536
    %1773 = vmatprep.subr.mxu0 0.0
    %1774 = vmatpush1.msra.mxu0 %v1535
    %1775 = vmatprep.subr.mxu0 0.0
    %1776 = vmatpush1.msra.mxu0 %v1534
    %1777 = vmatprep.subr.mxu0 0.0
    %1778 = vmatpush1.msra.mxu0 %v1533
    %1779 = vmatprep.subr.mxu0 0.0
    %1780 = vmatpush1.msra.mxu0 %v1532
    %1781 = vmatprep.subr.mxu0 0.0
    %1782 = vmatpush1.msra.mxu0 %v1531
    %1783 = vmatprep.subr.mxu0 0.0
    %1784 = vmatpush1.msra.mxu0 %v1530
    %1785 = vmatprep.subr.mxu0 0.0
    %1786 = vmatpush1.msra.mxu0 %v1529
    %1787 = vmatprep.subr.mxu0 0.0
    %1788 = vmatpush1.msra.mxu0 %v1528
    %1789 = vmatprep.subr.mxu0 0.0
    %1790 = vmatpush1.msra.mxu0 %v1527
    %1791 = vmatprep.subr.mxu0 0.0
    %1792 = vmatpush1.msra.mxu0 %v1526
    %1793 = vmatprep.subr.mxu0 0.0
    %1794 = vmatpush1.msra.mxu0 %v1525
    %1795 = vmatprep.subr.mxu0 0.0
    %1796 = vmatpush1.msra.mxu0 %v1524
    %1797 = vmatprep.subr.mxu0 0.0
    %1798 = vmatpush1.msra.mxu0 %v1523
    %1799 = vmatprep.subr.mxu0 0.0
    %1800 = vmatpush1.msra.mxu0 %v1522
    %1801 = vmatprep.subr.mxu0 0.0
    %1802 = vmatpush2.msra.mxu0 %v1553
    %1803 = vmatprep.subr.mxu0 0.0
    %1804 = vmatpush2.msra.mxu0 %v1552
    %1805 = vmatprep.subr.mxu0 0.0
    %1806 = vmatpush2.msra.mxu0 %v1551
    %1807 = vmatprep.subr.mxu0 0.0
    %1808 = vmatpush2.msra.mxu0 %v1550
    %1809 = vmatprep.subr.mxu0 0.0
    %1810 = vmatpush2.msra.mxu0 %v1549
    %1811 = vmatprep.subr.mxu0 0.0
    %1812 = vmatpush2.msra.mxu0 %v1548
    %1813 = vmatprep.subr.mxu0 0.0
    %1814 = vmatpush2.msra.mxu0 %v1547
    %1815 = vmatprep.subr.mxu0 0.0
    %1816 = vmatpush2.msra.mxu0 %v1546
    %1817 = vmatprep.subr.mxu0 0.0
    %1818 = vmatpush2.msra.mxu0 %v1545
    %1819 = vmatprep.subr.mxu0 0.0
    %1820 = vmatpush2.msra.mxu0 %v1544
    %1821 = vmatprep.subr.mxu0 0.0
    %1822 = vmatpush2.msra.mxu0 %v1543
    %1823 = vmatprep.subr.mxu0 0.0
    %1824 = vmatpush2.msra.mxu0 %v1542
    %1825 = vmatprep.subr.mxu0 0.0
    %1826 = vmatpush2.msra.mxu0 %v1541
    %1827 = vmatprep.subr.mxu0 0.0
    %1828 = vmatpush2.msra.mxu0 %v1540
    %1829 = vmatprep.subr.mxu0 0.0
    %1830 = vmatpush2.msra.mxu0 %v1539
    %1831 = vmatprep.subr.mxu0 0.0
    %1832 = vmatpush2.msra.mxu0 %v1538
    %1833 = vmatprep.mubr.f32.mxu0 %v1477
    %1834 = vmatmul.mubr.f32.gmra.mxu0 %v1476
    %v1835 = vpop.f32.mrf.mxu0
    %v1836 = vadd.f32 %v1761, %v1835
    %v1837 = vpop.f32.mrf.mxu0
    %1838 = vmatprep.mubr.f32.mxu0 %v1485
    %1839 = vmatmul.mubr.f32.gmra.mxu0 %v1484
    %v1840 = vpop.f32.mrf.mxu0
    %v1841 = vadd.f32 %v1766, %v1840
    %v1842 = vpop.f32.mrf.mxu0
    %1843 = vdwg.mxu0
    %1844 = vmatprep.subr.mxu0 0.0
    %1845 = vmatpush1.msra.mxu0 %v1569
    %1846 = vmatprep.subr.mxu0 0.0
    %1847 = vmatpush1.msra.mxu0 %v1568
    %1848 = vmatprep.subr.mxu0 0.0
    %1849 = vmatpush1.msra.mxu0 %v1567
    %1850 = vmatprep.subr.mxu0 0.0
    %1851 = vmatpush1.msra.mxu0 %v1566
    %1852 = vmatprep.subr.mxu0 0.0
    %1853 = vmatpush1.msra.mxu0 %v1565
    %1854 = vmatprep.subr.mxu0 0.0
    %1855 = vmatpush1.msra.mxu0 %v1564
    %1856 = vmatprep.subr.mxu0 0.0
    %1857 = vmatpush1.msra.mxu0 %v1563
    %1858 = vmatprep.subr.mxu0 0.0
    %1859 = vmatpush1.msra.mxu0 %v1562
    %1860 = vmatprep.subr.mxu0 0.0
    %1861 = vmatpush1.msra.mxu0 %v1561
    %1862 = vmatprep.subr.mxu0 0.0
    %1863 = vmatpush1.msra.mxu0 %v1560
    %1864 = vmatprep.subr.mxu0 0.0
    %1865 = vmatpush1.msra.mxu0 %v1559
    %1866 = vmatprep.subr.mxu0 0.0
    %1867 = vmatpush1.msra.mxu0 %v1558
    %1868 = vmatprep.subr.mxu0 0.0
    %1869 = vmatpush1.msra.mxu0 %v1557
    %1870 = vmatprep.subr.mxu0 0.0
    %1871 = vmatpush1.msra.mxu0 %v1556
    %1872 = vmatprep.subr.mxu0 0.0
    %1873 = vmatpush1.msra.mxu0 %v1555
    %1874 = vmatprep.subr.mxu0 0.0
    %1875 = vmatpush1.msra.mxu0 %v1554
    %1876 = vmatprep.subr.mxu0 0.0
    %1877 = vmatpush2.msra.mxu0 %v1585
    %1878 = vmatprep.subr.mxu0 0.0
    %1879 = vmatpush2.msra.mxu0 %v1584
    %1880 = vmatprep.subr.mxu0 0.0
    %1881 = vmatpush2.msra.mxu0 %v1583
    %1882 = vmatprep.subr.mxu0 0.0
    %1883 = vmatpush2.msra.mxu0 %v1582
    %1884 = vmatprep.subr.mxu0 0.0
    %1885 = vmatpush2.msra.mxu0 %v1581
    %1886 = vmatprep.subr.mxu0 0.0
    %1887 = vmatpush2.msra.mxu0 %v1580
    %1888 = vmatprep.subr.mxu0 0.0
    %1889 = vmatpush2.msra.mxu0 %v1579
    %1890 = vmatprep.subr.mxu0 0.0
    %1891 = vmatpush2.msra.mxu0 %v1578
    %1892 = vmatprep.subr.mxu0 0.0
    %1893 = vmatpush2.msra.mxu0 %v1577
    %1894 = vmatprep.subr.mxu0 0.0
    %1895 = vmatpush2.msra.mxu0 %v1576
    %1896 = vmatprep.subr.mxu0 0.0
    %1897 = vmatpush2.msra.mxu0 %v1575
    %1898 = vmatprep.subr.mxu0 0.0
    %1899 = vmatpush2.msra.mxu0 %v1574
    %1900 = vmatprep.subr.mxu0 0.0
    %1901 = vmatpush2.msra.mxu0 %v1573
    %1902 = vmatprep.subr.mxu0 0.0
    %1903 = vmatpush2.msra.mxu0 %v1572
    %1904 = vmatprep.subr.mxu0 0.0
    %1905 = vmatpush2.msra.mxu0 %v1571
    %1906 = vmatprep.subr.mxu0 0.0
    %1907 = vmatpush2.msra.mxu0 %v1570
    %1908 = vmatprep.mubr.f32.mxu0 %v1479
    %1909 = vmatmul.mubr.f32.gmra.mxu0 %v1478
    %v1910 = vpop.f32.mrf.mxu0
    %v1911 = vadd.f32 %v1836, %v1910
    %v1912 = vpop.f32.mrf.mxu0
    %1913 = vmatprep.mubr.f32.mxu0 %v1487
    %1914 = vmatmul.mubr.f32.gmra.mxu0 %v1486
    %v1915 = vpop.f32.mrf.mxu0
    %v1916 = vadd.f32 %v1841, %v1915
    %v1917 = vpop.f32.mrf.mxu0
    %1918 = vdwg.mxu0
    %1919 = vmatprep.subr.mxu0 0.0
    %1920 = vmatpush1.msra.mxu0 %v1601
    %1921 = vmatprep.subr.mxu0 0.0
    %1922 = vmatpush1.msra.mxu0 %v1600
    %1923 = vmatprep.subr.mxu0 0.0
    %1924 = vmatpush1.msra.mxu0 %v1599
    %1925 = vmatprep.subr.mxu0 0.0
    %1926 = vmatpush1.msra.mxu0 %v1598
    %1927 = vmatprep.subr.mxu0 0.0
    %1928 = vmatpush1.msra.mxu0 %v1597
    %1929 = vmatprep.subr.mxu0 0.0
    %1930 = vmatpush1.msra.mxu0 %v1596
    %1931 = vmatprep.subr.mxu0 0.0
    %1932 = vmatpush1.msra.mxu0 %v1595
    %1933 = vmatprep.subr.mxu0 0.0
    %1934 = vmatpush1.msra.mxu0 %v1594
    %1935 = vmatprep.subr.mxu0 0.0
    %1936 = vmatpush1.msra.mxu0 %v1593
    %1937 = vmatprep.subr.mxu0 0.0
    %1938 = vmatpush1.msra.mxu0 %v1592
    %1939 = vmatprep.subr.mxu0 0.0
    %1940 = vmatpush1.msra.mxu0 %v1591
    %1941 = vmatprep.subr.mxu0 0.0
    %1942 = vmatpush1.msra.mxu0 %v1590
    %1943 = vmatprep.subr.mxu0 0.0
    %1944 = vmatpush1.msra.mxu0 %v1589
    %1945 = vmatprep.subr.mxu0 0.0
    %1946 = vmatpush1.msra.mxu0 %v1588
    %1947 = vmatprep.subr.mxu0 0.0
    %1948 = vmatpush1.msra.mxu0 %v1587
    %1949 = vmatprep.subr.mxu0 0.0
    %1950 = vmatpush1.msra.mxu0 %v1586
    %1951 = vmatprep.subr.mxu0 0.0
    %1952 = vmatpush2.msra.mxu0 %v1617
    %1953 = vmatprep.subr.mxu0 0.0
    %1954 = vmatpush2.msra.mxu0 %v1616
    %1955 = vmatprep.subr.mxu0 0.0
    %1956 = vmatpush2.msra.mxu0 %v1615
    %1957 = vmatprep.subr.mxu0 0.0
    %1958 = vmatpush2.msra.mxu0 %v1614
    %1959 = vmatprep.subr.mxu0 0.0
    %1960 = vmatpush2.msra.mxu0 %v1613
    %1961 = vmatprep.subr.mxu0 0.0
    %1962 = vmatpush2.msra.mxu0 %v1612
    %1963 = vmatprep.subr.mxu0 0.0
    %1964 = vmatpush2.msra.mxu0 %v1611
    %1965 = vmatprep.subr.mxu0 0.0
    %1966 = vmatpush2.msra.mxu0 %v1610
    %1967 = vmatprep.subr.mxu0 0.0
    %1968 = vmatpush2.msra.mxu0 %v1609
    %1969 = vmatprep.subr.mxu0 0.0
    %1970 = vmatpush2.msra.mxu0 %v1608
    %1971 = vmatprep.subr.mxu0 0.0
    %1972 = vmatpush2.msra.mxu0 %v1607
    %1973 = vmatprep.subr.mxu0 0.0
    %1974 = vmatpush2.msra.mxu0 %v1606
    %1975 = vmatprep.subr.mxu0 0.0
    %1976 = vmatpush2.msra.mxu0 %v1605
    %1977 = vmatprep.subr.mxu0 0.0
    %1978 = vmatpush2.msra.mxu0 %v1604
    %1979 = vmatprep.subr.mxu0 0.0
    %1980 = vmatpush2.msra.mxu0 %v1603
    %1981 = vmatprep.subr.mxu0 0.0
    %1982 = vmatpush2.msra.mxu0 %v1602
    %1983 = vmatprep.mubr.f32.mxu0 %v1481
    %1984 = vmatmul.mubr.f32.gmra.mxu0 %v1480
    %v1985 = vpop.f32.mrf.mxu0
    %v1986 = vadd.f32 %v1911, %v1985
    %v1987 = vpop.f32.mrf.mxu0
    %1988 = vmatprep.mubr.f32.mxu0 %v1489
    %1989 = vmatmul.mubr.f32.gmra.mxu0 %v1488
    %v1990 = vpop.f32.mrf.mxu0
    %v1991 = vadd.f32 %v1916, %v1990
    %v1992 = vpop.f32.mrf.mxu0
    %1993 = vdwg.mxu0
    %1994 = vst.msk [vmem:[#allocation2] sm:$0xff] %vm43, %v1986
    %1995 = vst.msk [vmem:[#allocation2 + $0x8] sm:$0xff] %vm43, %v1991
    // Predicated region
    $region34: #{tpu_custom_call.1} parent=1 // pred_check
      _
    $region35: #{tpu_custom_call.1} parent=1 // pred_check_branch
      %1997 = sbr.rel (0) target = $region37
    $region36: #{tpu_custom_call.1} parent=1 // pred_region
      %s1999 = ssub.s32 256, 256
      %2000 = vsyncadd [#allocation3], %s1999
      %s2001 = sshll.u32 [#allocation2], 4
      %s2002 = int_to_ptr.vmem [resolvable:$true] %s2001
      %2007 = dma.vmem_to_hbm [thread:$0]  %s2002, 256, %s8, [#allocation3], 128, 128, 8
    $region37: #{tpu_custom_call.1} parent=1 // pred_fallthru
      _
    // Predicated region
    $region38: #{tpu_custom_call.1} parent=1 // pred_check
      _
    $region39: #{tpu_custom_call.1} parent=1 // pred_check_branch
      %2009 = sbr.rel (0) target = $region41
    $region40: #{tpu_custom_call.1} parent=1 // pred_region
      %2010 = dma.done [#allocation3], 256
    $region41: #{tpu_custom_call.1} parent=1 // pred_fallthru
      _
    %2011 = vsyncpa [#allocation3], 1

</llo_original>
